<compile_context>
chip_gen: v6e
topology: v6e:2x2x1
jax: 0.10.0
libtpu: 0.0.40
codegen_flags: <defaults>
</compile_context>

<pallas_src>
import jax
import jax.numpy as jnp
from jax.experimental import pallas as pl
from jax.experimental.pallas import tpu as pltpu

TIME_STEP = 39              # fixed by block_2 = Linear(39, 128) in the reference
NUM_SENSOR = 5              # small synthetic choice; conv_1 in-channels = 4
HIDDEN = 128
TC = TIME_STEP * NUM_SENSOR  # 195 flattened features per row

W0_ROWS = 48                # 39 conv rows + linear_1 row, padded to x8
A_ROWS = 40                 # rows fed through relu -> block_2 (sublane-aligned)
Z1_ROW = 40                 # sublane-aligned row holding linear_1 (outside A_ROWS)
WB_ROW = 0                  # block_1[2].weight row inside `wbd`
WD_ROW = 8                  # block_2[2].weight row inside `wbd` (aligned)

MAX_TILE_B = 8192           # batch rows per grid step
MIN_STEPS = 8               # aim for >= 8 grid steps so both TCs + pipeline engage


def _round_up(n, m):
    return ((n + m - 1) // m) * m


# ----------------------------------------------------------------------------
# Kernel: one grid step processes TILE_B rows, batch lives on the lane axis.
# ----------------------------------------------------------------------------
def panet_kernel(x_ref, w0_ref, pk_ref, wc_ref, wbd_ref, sb_ref, out_ref):
    x = x_ref[...]                                     # (TILE_B, 195) f32/bf16

    # Fused front-end: rows 0..38 = Conv1d(k=1) channel reduction (pre-bias),
    # row 40 = linear_1(feed) (pre-bias).  'mk,nk->mn' keeps batch on lanes.
    y = jax.lax.dot_general(
        w0_ref[...], x, (((1,), (1,)), ((), ())),
        preferred_element_type=jnp.float32)            # (48, TILE_B) f32

    # Folded scalar biases, read once from SMEM (no VMEM broadcast slices).
    b1 = sb_ref[0]                                     # linear_1.bias
    cb = sb_ref[1]                                     # conv_1.bias
    bf = sb_ref[2]                                     # block_1[2].bias + block_2[2].bias

    z1 = y[Z1_ROW:Z1_ROW + 1, :] + b1                  # (1, TILE_B)
    # relu(conv); MaxPool1d(kernel_size=1) is the identity.  Only rows [0,40)
    # are processed; row 39 is a zero row of W0 matched by a zero column of wc.
    a = jnp.maximum(y[0:A_ROWS, :] + cb, 0.0)          # (40, TILE_B)

    # block_1: Linear(1,128) -> ReLU -> Linear(128,1).
    # The K=1 "matmul" is a pure VPU outer product (no degenerate MXU call).
    wa = pk_ref[:, 0:1]                                # (128, 1) block_1[0].weight
    ba = pk_ref[:, 1:2]                                # (128, 1) block_1[0].bias
    h1 = jnp.maximum(wa * z1 + ba, 0.0)                # (128, TILE_B)
    z2 = jnp.dot(wbd_ref[WB_ROW:WB_ROW + 1, :], h1,
                 preferred_element_type=jnp.float32)   # (1, TILE_B)

    # block_2: Linear(39,128) -> ReLU -> Linear(128,1), transposed orientation.
    bc = pk_ref[:, 2:3]                                # (128, 1) block_2[0].bias
    h2 = jnp.maximum(
        jnp.dot(wc_ref[...], a, preferred_element_type=jnp.float32) + bc, 0.0)  # (128, TILE_B)
    z3 = jnp.dot(wbd_ref[WD_ROW:WD_ROW + 1, :], h2,
                 preferred_element_type=jnp.float32)   # (1, TILE_B)

    s = z1 + z2 + z3 + bf                              # (1, TILE_B)
    # Numerically stable sigmoid: 0.5*(tanh(s/2)+1)  (tanh runs on the EUP).
    out_ref[...] = 0.5 * (jnp.tanh(0.5 * s) + 1.0)     # lane-dense store


# ----------------------------------------------------------------------------
# Parameter init (PyTorch layouts, independent keys) and packing.
# ----------------------------------------------------------------------------
def init_params(key):
    ks = jax.random.split(key, 12)

    def unif(k, shape, fan_in):
        b = 1.0 / float(fan_in) ** 0.5
        return jax.random.uniform(k, shape, jnp.float32, -b, b)

    T, C, H = TIME_STEP, NUM_SENSOR, HIDDEN
    return dict(
        lin1_w=unif(ks[0], (1, T), T),        lin1_b=unif(ks[1], (1,), T),
        b1a_w=unif(ks[2], (H, 1), 1),         b1a_b=unif(ks[3], (H,), 1),
        b1c_w=unif(ks[4], (1, H), H),         b1c_b=unif(ks[5], (1,), H),
        conv_w=unif(ks[6], (1, C - 1, 1), C - 1), conv_b=unif(ks[7], (1,), C - 1),
        b2a_w=unif(ks[8], (H, T), T),         b2a_b=unif(ks[9], (H,), T),
        b2c_w=unif(ks[10], (1, H), H),        b2c_b=unif(ks[11], (1,), H),
    )


def pack_params(p):
    """Fold the 12 PyTorch tensors into 5 small kernel operands (done once)."""
    T, C, H = TIME_STEP, NUM_SENSOR, HIDDEN
    # Safety: the relu'd block fed to wc covers rows [0, A_ROWS); the linear_1
    # row must live outside it and the padding row(s) T..A_ROWS-1 must match
    # zero columns of wc, otherwise junk would leak into block_2.
    assert Z1_ROW >= A_ROWS and T <= A_ROWS <= W0_ROWS and A_ROWS % 8 == 0

    w1 = p["lin1_w"].reshape(T)
    cw = p["conv_w"].reshape(C - 1)

    # W0[t, t*C + c] = conv_w[c-1]  (c = 1..4), W0[Z1_ROW, t*C] = linear_1.w[t]
    w0 = jnp.zeros((W0_ROWS, TC), jnp.float32)
    t = jnp.arange(T)
    for c in range(1, C):
        w0 = w0.at[t, t * C + c].set(cw[c - 1])
    w0 = w0.at[Z1_ROW, t * C].set(w1)

    # pk: col0 = block_1[0].weight, col1 = block_1[0].bias, col2 = block_2[0].bias
    pk = jnp.zeros((H, 3), jnp.float32)
    pk = pk.at[:, 0].set(p["b1a_w"].reshape(H))
    pk = pk.at[:, 1].set(p["b1a_b"])
    pk = pk.at[:, 2].set(p["b2a_b"])

    # Scalar biases (SMEM): linear_1.b, conv_1.b, block_1[2].b + block_2[2].b
    sb = jnp.array([p["lin1_b"][0], p["conv_b"][0],
                    p["b1c_b"][0] + p["b2c_b"][0], 0.0], jnp.float32)

    # block_2[0].weight, zero-padded K: 39 -> 40 to match the relu'd slice.
    wc = jnp.zeros((H, A_ROWS), jnp.float32).at[:, :T].set(p["b2a_w"])

    # block_1[2].weight / block_2[2].weight rows at sublane-aligned offsets.
    wbd = jnp.zeros((16, H), jnp.float32)
    wbd = wbd.at[WB_ROW].set(p["b1c_w"][0])
    wbd = wbd.at[WD_ROW].set(p["b2c_w"][0])
    return (w0, pk, wc, wbd, sb)


# ----------------------------------------------------------------------------
# Forward wrapper: reshape -> gridded pallas_call (no full-array pad) -> reshape.
# ----------------------------------------------------------------------------
def panet_forward(x, packed):
    w0, pk, wc, wbd, sb = packed

    xflat = x.reshape(-1, TC)                          # fetch(): pure reshape, no copy
    # bf16 fast path: keep caller-supplied bf16 rows (halves bulk HBM bytes);
    # never astype the bulk input in the wrapper (that would add an HBM pass).
    if xflat.dtype != jnp.bfloat16:
        xflat = xflat.astype(jnp.float32)              # no-op when already f32
    w0c = w0.astype(xflat.dtype)                       # tiny operand, cheap cast
    B = xflat.shape[0]

    # Tile choice: ~B/MIN_STEPS rows per step (multi-step grid -> both v7x TCs
    # + DMA prefetch), rounded to 512 lanes, capped at 8192 (fits 48 MiB VMEM).
    tile_b = max(512, min(MAX_TILE_B, _round_up(pl.cdiv(B, MIN_STEPS), 512)))
    grid = (pl.cdiv(B, tile_b),)                       # partial last tile handled by Pallas

    cost = pl.CostEstimate(flops=30_000 * B,
                           transcendentals=B,
                           bytes_accessed=784 * B + 110_000)

    out_row = pl.pallas_call(
        panet_kernel,
        out_shape=jax.ShapeDtypeStruct((1, B), jnp.float32),
        grid=grid,
        in_specs=[
            pl.BlockSpec((tile_b, TC), lambda i: (i, 0)),    # bulk rows, tiled over batch
            pl.BlockSpec(w0c.shape, lambda i: (0, 0)),       # params: resident in VMEM
            pl.BlockSpec(pk.shape, lambda i: (0, 0)),
            pl.BlockSpec(wc.shape, lambda i: (0, 0)),
            pl.BlockSpec(wbd.shape, lambda i: (0, 0)),
            pl.BlockSpec(memory_space=pltpu.MemorySpace.SMEM),  # scalar biases
        ],
        out_specs=pl.BlockSpec((1, tile_b), lambda i: (0, i)),  # lane-dense output slab
        compiler_params=pltpu.CompilerParams(
            dimension_semantics=("parallel",),
            vmem_limit_bytes=48 * 1024 * 1024,          # sized for v7x's 64 MiB VMEM
        ),
        cost_estimate=cost,
    )(xflat, w0c, pk, wc, wbd, sb)

    return out_row[0].reshape(B, 1)


# ----------------------------------------------------------------------------
# Pure-JAX reference (mirrors the PyTorch module exactly) for validation.
# ----------------------------------------------------------------------------
def panet_reference(x, p):
    T, C = TIME_STEP, NUM_SENSOR
    xr = x.reshape(-1, T, C)
    feed = xr[:, :, 0]                                       # (B, T)
    factor = jnp.transpose(xr[:, :, 1:], (0, 2, 1))          # (B, C-1, T)
    z1 = feed @ p["lin1_w"].T + p["lin1_b"]                  # (B, 1)
    h1 = jax.nn.relu(z1 @ p["b1a_w"].T + p["b1a_b"])         # (B, 128)
    z2 = h1 @ p["b1c_w"].T + p["b1c_b"]                      # (B, 1)
    conv = jnp.einsum("bct,oc->bot", factor, p["conv_w"][:, :, 0]) \
        + p["conv_b"][None, :, None]                         # (B, 1, T)
    z3f = jax.nn.relu(conv).reshape(-1, T)                   # pool(k=1) == identity
    h2 = jax.nn.relu(z3f @ p["b2a_w"].T + p["b2a_b"])        # (B, 128)
    z3 = h2 @ p["b2c_w"].T + p["b2c_b"]                      # (B, 1)
    return jax.nn.sigmoid(z1 + z2 + z3)


if __name__ == "__main__":
    key = jax.random.PRNGKey(0)
    kx, kx2, kp = jax.random.split(key, 3)

    params = init_params(kp)
    packed = pack_params(params)

    # Small primary test (B=2).
    B = 2
    x = jax.random.normal(kx, (B, TIME_STEP, NUM_SENSOR), dtype=jnp.float32)
    out = jax.block_until_ready(panet_forward(x, packed))
    ref = panet_reference(x, params)
    assert out.shape == (B, 1)
    assert bool(jnp.all(jnp.isfinite(out)))
    assert bool(jnp.allclose(out, ref, atol=5e-3, rtol=5e-3)), (out, ref)

    # Secondary test exercising a multi-step grid with a partial last tile.
    B2 = 600
    x2 = jax.random.normal(kx2, (B2, TIME_STEP, NUM_SENSOR), dtype=jnp.float32)
    out2 = jax.block_until_ready(panet_forward(x2, packed))
    ref2 = panet_reference(x2, params)
    assert out2.shape == (B2, 1)
    assert bool(jnp.all(jnp.isfinite(out2)))
    assert bool(jnp.allclose(out2, ref2, atol=5e-3, rtol=5e-3))

    print("KERNEL_OK")
</pallas_src>

<mosaic_0001>
module attributes {stable_mosaic.version = 11 : i64} {
  func.func @panet_kernel(%arg0: i32, %arg1: memref<512x195xf32, #tpu.memory_space<vmem>>, %arg2: memref<48x195xf32, #tpu.memory_space<vmem>>, %arg3: memref<128x3xf32, #tpu.memory_space<vmem>>, %arg4: memref<128x40xf32, #tpu.memory_space<vmem>>, %arg5: memref<16x128xf32, #tpu.memory_space<vmem>>, %arg6: memref<4xf32, #tpu.memory_space<smem>>, %arg7: memref<1x512xf32, #tpu.memory_space<vmem>>) attributes {dimension_semantics = [#tpu.dimension_semantics<parallel>], iteration_bounds = array<i64: 1>, scalar_prefetch = 0 : i64, scratch_operands = 0 : i64, tpu.core_type = #tpu.core_type<tc>, window_params = [{transform_indices = @transform_0, window_bounds = array<i64: 512, 195>}, {pipeline_mode = #tpu.pipeline_mode<synchronous>, transform_indices = @transform_1, window_bounds = array<i64: 48, 195>}, {pipeline_mode = #tpu.pipeline_mode<synchronous>, transform_indices = @transform_2, window_bounds = array<i64: 128, 3>}, {pipeline_mode = #tpu.pipeline_mode<synchronous>, transform_indices = @transform_3, window_bounds = array<i64: 128, 40>}, {pipeline_mode = #tpu.pipeline_mode<synchronous>, transform_indices = @transform_4, window_bounds = array<i64: 16, 128>}, {transform_indices = @transform_5, window_bounds = array<i64: 4>}, {transform_indices = @transform_6, window_bounds = array<i64: 1, 512>}]} {
    %c0 = arith.constant 0 : index
    %c0_0 = arith.constant 0 : index
    %0 = vector.load %arg1[%c0, %c0_0] : memref<512x195xf32, #tpu.memory_space<vmem>>, vector<512x195xf32>
    %c0_1 = arith.constant 0 : index
    %c0_2 = arith.constant 0 : index
    %1 = vector.load %arg2[%c0_1, %c0_2] : memref<48x195xf32, #tpu.memory_space<vmem>>, vector<48x195xf32>
    %cst = arith.constant dense<0.000000e+00> : vector<48x512xf32>
    %2 = tpu.matmul %1, %0, %cst {dimension_numbers = #tpu.dot_dimension_numbers<[1], [1], [0], [0], [0, 0, 1, 0], [], []>} : vector<48x195xf32>, vector<512x195xf32>, vector<48x512xf32> -> vector<48x512xf32>
    %c0_3 = arith.constant 0 : index
    %3 = memref.load %arg6[%c0_3] : memref<4xf32, #tpu.memory_space<smem>>
    %c1 = arith.constant 1 : index
    %4 = memref.load %arg6[%c1] : memref<4xf32, #tpu.memory_space<smem>>
    %c2 = arith.constant 2 : index
    %5 = memref.load %arg6[%c2] : memref<4xf32, #tpu.memory_space<smem>>
    %6 = vector.extract_strided_slice %2 {offsets = [40, 0], sizes = [1, 512], strides = [1, 1]} : vector<48x512xf32> to vector<1x512xf32>
    %7 = vector.broadcast %3 : f32 to vector<1x512xf32>
    %8 = arith.addf %6, %7 : vector<1x512xf32>
    %9 = vector.extract_strided_slice %2 {offsets = [0, 0], sizes = [40, 512], strides = [1, 1]} : vector<48x512xf32> to vector<40x512xf32>
    %10 = vector.broadcast %4 : f32 to vector<40x512xf32>
    %11 = arith.addf %9, %10 : vector<40x512xf32>
    %cst_4 = arith.constant 0.000000e+00 : f32
    %12 = vector.broadcast %cst_4 : f32 to vector<40x512xf32>
    %13 = arith.maximumf %11, %12 : vector<40x512xf32>
    %c0_5 = arith.constant 0 : index
    %c0_6 = arith.constant 0 : index
    %14 = vector.load %arg3[%c0_5, %c0_6] : memref<128x3xf32, #tpu.memory_space<vmem>>, vector<128x1xf32>
    %c0_7 = arith.constant 0 : index
    %c1_8 = arith.constant 1 : index
    %15 = vector.load %arg3[%c0_7, %c1_8] : memref<128x3xf32, #tpu.memory_space<vmem>>, vector<128x1xf32>
    %16 = vector.broadcast %14 : vector<128x1xf32> to vector<128x512xf32>
    %17 = vector.broadcast %8 : vector<1x512xf32> to vector<128x512xf32>
    %18 = arith.mulf %16, %17 : vector<128x512xf32>
    %19 = vector.broadcast %15 : vector<128x1xf32> to vector<128x512xf32>
    %20 = arith.addf %18, %19 : vector<128x512xf32>
    %cst_9 = arith.constant 0.000000e+00 : f32
    %21 = vector.broadcast %cst_9 : f32 to vector<128x512xf32>
    %22 = arith.maximumf %20, %21 : vector<128x512xf32>
    %c0_10 = arith.constant 0 : index
    %c0_11 = arith.constant 0 : index
    %23 = vector.load %arg5[%c0_10, %c0_11] : memref<16x128xf32, #tpu.memory_space<vmem>>, vector<1x128xf32>
    %cst_12 = arith.constant dense<0.000000e+00> : vector<1x512xf32>
    %24 = tpu.matmul %23, %22, %cst_12 {dimension_numbers = #tpu.dot_dimension_numbers<[1], [0], [0], [1], [0, 0, 1, 1], [], []>} : vector<1x128xf32>, vector<128x512xf32>, vector<1x512xf32> -> vector<1x512xf32>
    %c0_13 = arith.constant 0 : index
    %c2_14 = arith.constant 2 : index
    %25 = vector.load %arg3[%c0_13, %c2_14] : memref<128x3xf32, #tpu.memory_space<vmem>>, vector<128x1xf32>
    %c0_15 = arith.constant 0 : index
    %c0_16 = arith.constant 0 : index
    %26 = vector.load %arg4[%c0_15, %c0_16] : memref<128x40xf32, #tpu.memory_space<vmem>>, vector<128x40xf32>
    %cst_17 = arith.constant dense<0.000000e+00> : vector<128x512xf32>
    %27 = tpu.matmul %26, %13, %cst_17 {dimension_numbers = #tpu.dot_dimension_numbers<[1], [0], [0], [1], [0, 0, 1, 1], [], []>} : vector<128x40xf32>, vector<40x512xf32>, vector<128x512xf32> -> vector<128x512xf32>
    %28 = vector.broadcast %25 : vector<128x1xf32> to vector<128x512xf32>
    %29 = arith.addf %27, %28 : vector<128x512xf32>
    %cst_18 = arith.constant 0.000000e+00 : f32
    %30 = vector.broadcast %cst_18 : f32 to vector<128x512xf32>
    %31 = arith.maximumf %29, %30 : vector<128x512xf32>
    %c8 = arith.constant 8 : index
    %c0_19 = arith.constant 0 : index
    %32 = vector.load %arg5[%c8, %c0_19] : memref<16x128xf32, #tpu.memory_space<vmem>>, vector<1x128xf32>
    %cst_20 = arith.constant dense<0.000000e+00> : vector<1x512xf32>
    %33 = tpu.matmul %32, %31, %cst_20 {dimension_numbers = #tpu.dot_dimension_numbers<[1], [0], [0], [1], [0, 0, 1, 1], [], []>} : vector<1x128xf32>, vector<128x512xf32>, vector<1x512xf32> -> vector<1x512xf32>
    %34 = arith.addf %8, %24 : vector<1x512xf32>
    %35 = arith.addf %34, %33 : vector<1x512xf32>
    %36 = vector.broadcast %5 : f32 to vector<1x512xf32>
    %37 = arith.addf %35, %36 : vector<1x512xf32>
    %cst_21 = arith.constant 5.000000e-01 : f32
    %38 = vector.broadcast %cst_21 : f32 to vector<1x512xf32>
    %39 = arith.mulf %38, %37 : vector<1x512xf32>
    %40 = math.tanh %39 : vector<1x512xf32>
    %cst_22 = arith.constant 1.000000e+00 : f32
    %41 = vector.broadcast %cst_22 : f32 to vector<1x512xf32>
    %42 = arith.addf %40, %41 : vector<1x512xf32>
    %cst_23 = arith.constant 5.000000e-01 : f32
    %43 = vector.broadcast %cst_23 : f32 to vector<1x512xf32>
    %44 = arith.mulf %43, %42 : vector<1x512xf32>
    %c0_24 = arith.constant 0 : index
    %c0_25 = arith.constant 0 : index
    %45 = vector.load %arg7[%c0_24, %c0_25] : memref<1x512xf32, #tpu.memory_space<vmem>>, vector<1x512xf32>
    tpu.vector_store %arg7[%c0_24, %c0_25], %44 {strides = array<i32>} : memref<1x512xf32, #tpu.memory_space<vmem>>, vector<1x512xf32>,
    return
  }
  func.func @transform_0(%arg0: i32) -> (i32, i32) {
    %c0_i32 = arith.constant 0 : i32
    %c0_i32_0 = arith.constant 0 : i32
    return %arg0, %c0_i32 : i32, i32
  }
  func.func @transform_1(%arg0: i32) -> (i32, i32) {
    %c0_i32 = arith.constant 0 : i32
    %c0_i32_0 = arith.constant 0 : i32
    %c0_i32_1 = arith.constant 0 : i32
    return %c0_i32, %c0_i32_0 : i32, i32
  }
  func.func @transform_2(%arg0: i32) -> (i32, i32) {
    %c0_i32 = arith.constant 0 : i32
    %c0_i32_0 = arith.constant 0 : i32
    %c0_i32_1 = arith.constant 0 : i32
    return %c0_i32, %c0_i32_0 : i32, i32
  }
  func.func @transform_3(%arg0: i32) -> (i32, i32) {
    %c0_i32 = arith.constant 0 : i32
    %c0_i32_0 = arith.constant 0 : i32
    %c0_i32_1 = arith.constant 0 : i32
    return %c0_i32, %c0_i32_0 : i32, i32
  }
  func.func @transform_4(%arg0: i32) -> (i32, i32) {
    %c0_i32 = arith.constant 0 : i32
    %c0_i32_0 = arith.constant 0 : i32
    %c0_i32_1 = arith.constant 0 : i32
    return %c0_i32, %c0_i32_0 : i32, i32
  }
  func.func @transform_5(%arg0: i32) -> i32 {
    %c0_i32 = arith.constant 0 : i32
    %c0_i32_0 = arith.constant 0 : i32
    return %c0_i32 : i32
  }
  func.func @transform_6(%arg0: i32) -> (i32, i32) {
    %c0_i32 = arith.constant 0 : i32
    %c0_i32_0 = arith.constant 0 : i32
    return %c0_i32, %arg0 : i32, i32
  }
}

</mosaic_0001>

<llo_original>
// kernel: tpu_custom_call.1
$region0: #{tpu_custom_call.1}
  #allocation0 [shape = 'u32[]', space=smem, size = 0x4, offset = 0x4, fixed_abs, tag = 'smem constant byte address 0x4 - core index']
  #allocation1 [shape = 'u32[144,128]{1,0:T(1,128)}', space=vmem, size = 0x12000, scoped, tag = 'internal scratch']
  %s0 = inlined_call_operand.vmem [shape: f32[2,195], index: 0, kind: input, shape index: {}]
  %s1 = inlined_call_operand.vmem [shape: f32[48,195], index: 1, kind: input, shape index: {}]
  %s2 = inlined_call_operand.vmem [shape: f32[128,3], index: 2, kind: input, shape index: {}]
  %s3 = inlined_call_operand.vmem [shape: f32[128,40], index: 3, kind: input, shape index: {}]
  %s4 = inlined_call_operand.vmem [shape: f32[16,128], index: 4, kind: input, shape index: {}]
  %s5 = inlined_call_operand.vmem [shape: f32[4], index: 5, kind: input, shape index: {}]
  %s6 = inlined_call_operand.hbm [shape: f32[1,2], index: 6, kind: output, shape index: {}]
  %s7 = sld [smem:[#allocation0]]
  $region38: #{tpu_custom_call.1} parent=0
    _
  %s9 = ssub.s32 1, %s7
  %s10 = scalar_select 0, %s9, %s7
  $region1: #{tpu_custom_call.1} parent=0
    #allocation2 [shape = 'u8[512]{0}', space=smem, size = 0x200, scoped, tag = 'input window, operand 5, single buffered']
    #allocation3 [shape = 's32[1]{0}', space=sflag, size = 0x4, scoped, tag = 'scoped memory for tpu_custom_call.1']
    #allocation4 [shape = 's32[1]{0}', space=sflag, size = 0x4, scoped, tag = 'scoped memory for tpu_custom_call.1']
    #allocation5 [shape = 'u8[2048]{0}', space=vmem, size = 0x800, scoped, tag = 'output window, operand 0, single buffered']
    %11 = vsyncpa [#allocation4], 0
    %12 = vsyncpa [#allocation3], 0
    // Predicated region
    $region2: #{tpu_custom_call.1} parent=1 // pred_check
      _
    $region3: #{tpu_custom_call.1} parent=1 // pred_check_branch
      %14 = sbr.rel (0) target = $region5
    $region4: #{tpu_custom_call.1} parent=1 // pred_region
      _
    $region5: #{tpu_custom_call.1} parent=1 // pred_fallthru
      _
    // Predicated region
    $region6: #{tpu_custom_call.1} parent=1 // pred_check
      _
    $region7: #{tpu_custom_call.1} parent=1 // pred_check_branch
      %16 = sbr.rel (0) target = $region9
    $region8: #{tpu_custom_call.1} parent=1 // pred_region
      _
    $region9: #{tpu_custom_call.1} parent=1 // pred_fallthru
      _
    // Predicated region
    $region10: #{tpu_custom_call.1} parent=1 // pred_check
      _
    $region11: #{tpu_custom_call.1} parent=1 // pred_check_branch
      %18 = sbr.rel (0) target = $region13
    $region12: #{tpu_custom_call.1} parent=1 // pred_region
      _
    $region13: #{tpu_custom_call.1} parent=1 // pred_fallthru
      _
    // Predicated region
    $region14: #{tpu_custom_call.1} parent=1 // pred_check
      _
    $region15: #{tpu_custom_call.1} parent=1 // pred_check_branch
      %20 = sbr.rel (0) target = $region17
    $region16: #{tpu_custom_call.1} parent=1 // pred_region
      _
    $region17: #{tpu_custom_call.1} parent=1 // pred_fallthru
      _
    // Predicated region
    $region18: #{tpu_custom_call.1} parent=1 // pred_check
      _
    $region19: #{tpu_custom_call.1} parent=1 // pred_check_branch
      %22 = sbr.rel (0) target = $region21
    $region20: #{tpu_custom_call.1} parent=1 // pred_region
      _
    $region21: #{tpu_custom_call.1} parent=1 // pred_fallthru
      _
    // Predicated region
    $region22: #{tpu_custom_call.1} parent=1 // pred_check
      _
    $region23: #{tpu_custom_call.1} parent=1 // pred_check_branch
      %24 = sbr.rel (0) target = $region25
    $region24: #{tpu_custom_call.1} parent=1 // pred_region
      %s26 = ssub.s32 16, 16
      %27 = vsyncadd [#allocation4], %s26
      %s29 = sshll.u32 %s5, 4
      %s30 = int_to_ptr.vmem [resolvable:$true] %s29
      %32 = dma.vmem_to_smem %s30, 16, [#allocation2], [#allocation4]
    $region25: #{tpu_custom_call.1} parent=1 // pred_fallthru
      _
    // Predicated region
    $region26: #{tpu_custom_call.1} parent=1 // pred_check
      _
    $region27: #{tpu_custom_call.1} parent=1 // pred_check_branch
      %34 = sbr.rel (0) target = $region29
    $region28: #{tpu_custom_call.1} parent=1 // pred_region
      %35 = dma.done [#allocation4], 16
    $region29: #{tpu_custom_call.1} parent=1 // pred_fallthru
      _
    %36 = sfence
    %v37 = vld [vmem:[%s0] sm:$0xf]
    %v38 = vld [vmem:[%s0 + $0x4] sm:$0xf]
    %v39 = vld [vmem:[%s0 + $0x8] sm:$0xf]
    %v40 = vld [vmem:[%s0 + $0xc] sm:$0xf]
    %v41 = vld [vmem:[%s0 + $0x10] sm:$0xf]
    %v42 = vld [vmem:[%s0 + $0x14] sm:$0xf]
    %v43 = vld [vmem:[%s0 + $0x18] sm:$0xf]
    %v44 = vld [vmem:[%s0 + $0x1c] sm:$0xf]
    %v45 = vld [vmem:[%s0 + $0x20] sm:$0xf]
    %v46 = vld [vmem:[%s0 + $0x24] sm:$0xf]
    %v47 = vld [vmem:[%s0 + $0x28] sm:$0xf]
    %v48 = vld [vmem:[%s0 + $0x2c] sm:$0xf]
    %v49 = vld [vmem:[%s0 + $0x30] sm:$0xf]
    %v50 = vld [vmem:[%s0 + $0x34] sm:$0xf]
    %v51 = vld [vmem:[%s0 + $0x38] sm:$0xf]
    %v52 = vld [vmem:[%s0 + $0x3c] sm:$0xf]
    %v53 = vld [vmem:[%s0 + $0x40] sm:$0xf]
    %v54 = vld [vmem:[%s0 + $0x44] sm:$0xf]
    %v55 = vld [vmem:[%s0 + $0x48] sm:$0xf]
    %v56 = vld [vmem:[%s0 + $0x4c] sm:$0xf]
    %v57 = vld [vmem:[%s0 + $0x50] sm:$0xf]
    %v58 = vld [vmem:[%s0 + $0x54] sm:$0xf]
    %v59 = vld [vmem:[%s0 + $0x58] sm:$0xf]
    %v60 = vld [vmem:[%s0 + $0x5c] sm:$0xf]
    %v61 = vld [vmem:[%s0 + $0x60] sm:$0xf]
    %v62 = vld [vmem:[%s0 + $0x64] sm:$0xf]
    %v63 = vld [vmem:[%s0 + $0x68] sm:$0xf]
    %v64 = vld [vmem:[%s0 + $0x6c] sm:$0xf]
    %v65 = vld [vmem:[%s0 + $0x70] sm:$0xf]
    %v66 = vld [vmem:[%s0 + $0x74] sm:$0xf]
    %v67 = vld [vmem:[%s0 + $0x78] sm:$0xf]
    %v68 = vld [vmem:[%s0 + $0x7c] sm:$0xf]
    %v69 = vld [vmem:[%s0 + $0x80] sm:$0xf]
    %v70 = vld [vmem:[%s0 + $0x84] sm:$0xf]
    %v71 = vld [vmem:[%s0 + $0x88] sm:$0xf]
    %v72 = vld [vmem:[%s0 + $0x8c] sm:$0xf]
    %v73 = vld [vmem:[%s0 + $0x90] sm:$0xf]
    %v74 = vld [vmem:[%s0 + $0x94] sm:$0xf]
    %v75 = vld [vmem:[%s0 + $0x98] sm:$0xf]
    %v76 = vld [vmem:[%s0 + $0x9c] sm:$0xf]
    %v77 = vld [vmem:[%s0 + $0xa0] sm:$0xf]
    %v78 = vld [vmem:[%s0 + $0xa4] sm:$0xf]
    %v79 = vld [vmem:[%s0 + $0xa8] sm:$0xf]
    %v80 = vld [vmem:[%s0 + $0xac] sm:$0xf]
    %v81 = vld [vmem:[%s0 + $0xb0] sm:$0xf]
    %v82 = vld [vmem:[%s0 + $0xb4] sm:$0xf]
    %v83 = vld [vmem:[%s0 + $0xb8] sm:$0xf]
    %v84 = vld [vmem:[%s0 + $0xbc] sm:$0xf]
    %v85 = vld [vmem:[%s0 + $0xc0] sm:$0xf]
    %v86 = vld [vmem:[%s0 + $0xc4] sm:$0xf]
    %v87 = vld [vmem:[%s0 + $0xc8] sm:$0xf]
    %v88 = vld [vmem:[%s0 + $0xcc] sm:$0xf]
    %v89 = vld [vmem:[%s0 + $0xd0] sm:$0xf]
    %v90 = vld [vmem:[%s0 + $0xd4] sm:$0xf]
    %v91 = vld [vmem:[%s0 + $0xd8] sm:$0xf]
    %v92 = vld [vmem:[%s0 + $0xdc] sm:$0xf]
    %v93 = vld [vmem:[%s0 + $0xe0] sm:$0xf]
    %v94 = vld [vmem:[%s0 + $0xe4] sm:$0xf]
    %v95 = vld [vmem:[%s0 + $0xe8] sm:$0xf]
    %v96 = vld [vmem:[%s0 + $0xec] sm:$0xf]
    %v97 = vld [vmem:[%s0 + $0xf0] sm:$0xf]
    %v98 = vld [vmem:[%s0 + $0xf4] sm:$0xf]
    %v99 = vld [vmem:[%s0 + $0xf8] sm:$0xf]
    %v100 = vld [vmem:[%s0 + $0xfc] sm:$0xf]
    %v101 = vld [vmem:[%s0 + $0x100] sm:$0xf]
    %v102 = vld [vmem:[%s0 + $0x104] sm:$0xf]
    %v103 = vld [vmem:[%s0 + $0x108] sm:$0xf]
    %v104 = vld [vmem:[%s0 + $0x10c] sm:$0xf]
    %v105 = vld [vmem:[%s0 + $0x110] sm:$0xf]
    %v106 = vld [vmem:[%s0 + $0x114] sm:$0xf]
    %v107 = vld [vmem:[%s0 + $0x118] sm:$0xf]
    %v108 = vld [vmem:[%s0 + $0x11c] sm:$0xf]
    %v109 = vld [vmem:[%s0 + $0x120] sm:$0xf]
    %v110 = vld [vmem:[%s0 + $0x124] sm:$0xf]
    %v111 = vld [vmem:[%s0 + $0x128] sm:$0xf]
    %v112 = vld [vmem:[%s0 + $0x12c] sm:$0xf]
    %v113 = vld [vmem:[%s0 + $0x130] sm:$0xf]
    %v114 = vld [vmem:[%s0 + $0x134] sm:$0xf]
    %v115 = vld [vmem:[%s0 + $0x138] sm:$0xf]
    %v116 = vld [vmem:[%s0 + $0x13c] sm:$0xf]
    %v117 = vld [vmem:[%s0 + $0x140] sm:$0xf]
    %v118 = vld [vmem:[%s0 + $0x144] sm:$0xf]
    %v119 = vld [vmem:[%s0 + $0x148] sm:$0xf]
    %v120 = vld [vmem:[%s0 + $0x14c] sm:$0xf]
    %v121 = vld [vmem:[%s0 + $0x150] sm:$0xf]
    %v122 = vld [vmem:[%s0 + $0x154] sm:$0xf]
    %v123 = vld [vmem:[%s0 + $0x158] sm:$0xf]
    %v124 = vld [vmem:[%s0 + $0x15c] sm:$0xf]
    %v125 = vld [vmem:[%s0 + $0x160] sm:$0xf]
    %v126 = vld [vmem:[%s0 + $0x164] sm:$0xf]
    %v127 = vld [vmem:[%s0 + $0x168] sm:$0xf]
    %v128 = vld [vmem:[%s0 + $0x16c] sm:$0xf]
    %v129 = vld [vmem:[%s0 + $0x170] sm:$0xf]
    %v130 = vld [vmem:[%s0 + $0x174] sm:$0xf]
    %v131 = vld [vmem:[%s0 + $0x178] sm:$0xf]
    %v132 = vld [vmem:[%s0 + $0x17c] sm:$0xf]
    %v133 = vld [vmem:[%s0 + $0x180] sm:$0xf]
    %v134 = vld [vmem:[%s0 + $0x184] sm:$0xf]
    %v135 = vld [vmem:[%s0 + $0x188] sm:$0xf]
    %v136 = vld [vmem:[%s0 + $0x18c] sm:$0xf]
    %v137 = vld [vmem:[%s0 + $0x190] sm:$0xf]
    %v138 = vld [vmem:[%s0 + $0x194] sm:$0xf]
    %v139 = vld [vmem:[%s0 + $0x198] sm:$0xf]
    %v140 = vld [vmem:[%s0 + $0x19c] sm:$0xf]
    %v141 = vld [vmem:[%s0 + $0x1a0] sm:$0xf]
    %v142 = vld [vmem:[%s0 + $0x1a4] sm:$0xf]
    %v143 = vld [vmem:[%s0 + $0x1a8] sm:$0xf]
    %v144 = vld [vmem:[%s0 + $0x1ac] sm:$0xf]
    %v145 = vld [vmem:[%s0 + $0x1b0] sm:$0xf]
    %v146 = vld [vmem:[%s0 + $0x1b4] sm:$0xf]
    %v147 = vld [vmem:[%s0 + $0x1b8] sm:$0xf]
    %v148 = vld [vmem:[%s0 + $0x1bc] sm:$0xf]
    %v149 = vld [vmem:[%s0 + $0x1c0] sm:$0xf]
    %v150 = vld [vmem:[%s0 + $0x1c4] sm:$0xf]
    %v151 = vld [vmem:[%s0 + $0x1c8] sm:$0xf]
    %v152 = vld [vmem:[%s0 + $0x1cc] sm:$0xf]
    %v153 = vld [vmem:[%s0 + $0x1d0] sm:$0xf]
    %v154 = vld [vmem:[%s0 + $0x1d4] sm:$0xf]
    %v155 = vld [vmem:[%s0 + $0x1d8] sm:$0xf]
    %v156 = vld [vmem:[%s0 + $0x1dc] sm:$0xf]
    %v157 = vld [vmem:[%s0 + $0x1e0] sm:$0xf]
    %v158 = vld [vmem:[%s0 + $0x1e4] sm:$0xf]
    %v159 = vld [vmem:[%s0 + $0x1e8] sm:$0xf]
    %v160 = vld [vmem:[%s0 + $0x1ec] sm:$0xf]
    %v161 = vld [vmem:[%s0 + $0x1f0] sm:$0xf]
    %v162 = vld [vmem:[%s0 + $0x1f4] sm:$0xf]
    %v163 = vld [vmem:[%s0 + $0x1f8] sm:$0xf]
    %v164 = vld [vmem:[%s0 + $0x1fc] sm:$0xf]
    %v165 = vld [vmem:[%s0 + $0x200] sm:$0xf]
    %v166 = vld [vmem:[%s0 + $0x204] sm:$0xf]
    %v167 = vld [vmem:[%s0 + $0x208] sm:$0xf]
    %v168 = vld [vmem:[%s0 + $0x20c] sm:$0xf]
    %v169 = vld [vmem:[%s0 + $0x210] sm:$0xf]
    %v170 = vld [vmem:[%s0 + $0x214] sm:$0xf]
    %v171 = vld [vmem:[%s0 + $0x218] sm:$0xf]
    %v172 = vld [vmem:[%s0 + $0x21c] sm:$0xf]
    %v173 = vld [vmem:[%s0 + $0x220] sm:$0xf]
    %v174 = vld [vmem:[%s0 + $0x224] sm:$0xf]
    %v175 = vld [vmem:[%s0 + $0x228] sm:$0xf]
    %v176 = vld [vmem:[%s0 + $0x22c] sm:$0xf]
    %v177 = vld [vmem:[%s0 + $0x230] sm:$0xf]
    %v178 = vld [vmem:[%s0 + $0x234] sm:$0xf]
    %v179 = vld [vmem:[%s0 + $0x238] sm:$0xf]
    %v180 = vld [vmem:[%s0 + $0x23c] sm:$0xf]
    %v181 = vld [vmem:[%s0 + $0x240] sm:$0xf]
    %v182 = vld [vmem:[%s0 + $0x244] sm:$0xf]
    %v183 = vld [vmem:[%s0 + $0x248] sm:$0xf]
    %v184 = vld [vmem:[%s0 + $0x24c] sm:$0xf]
    %v185 = vld [vmem:[%s0 + $0x250] sm:$0xf]
    %v186 = vld [vmem:[%s0 + $0x254] sm:$0xf]
    %v187 = vld [vmem:[%s0 + $0x258] sm:$0xf]
    %v188 = vld [vmem:[%s0 + $0x25c] sm:$0xf]
    %v189 = vld [vmem:[%s0 + $0x260] sm:$0xf]
    %v190 = vld [vmem:[%s0 + $0x264] sm:$0xf]
    %v191 = vld [vmem:[%s0 + $0x268] sm:$0xf]
    %v192 = vld [vmem:[%s0 + $0x26c] sm:$0xf]
    %v193 = vld [vmem:[%s0 + $0x270] sm:$0xf]
    %v194 = vld [vmem:[%s0 + $0x274] sm:$0xf]
    %v195 = vld [vmem:[%s0 + $0x278] sm:$0xf]
    %v196 = vld [vmem:[%s0 + $0x27c] sm:$0xf]
    %v197 = vld [vmem:[%s0 + $0x280] sm:$0xf]
    %v198 = vld [vmem:[%s0 + $0x284] sm:$0xf]
    %v199 = vld [vmem:[%s0 + $0x288] sm:$0xf]
    %v200 = vld [vmem:[%s0 + $0x28c] sm:$0xf]
    %v201 = vld [vmem:[%s0 + $0x290] sm:$0xf]
    %v202 = vld [vmem:[%s0 + $0x294] sm:$0xf]
    %v203 = vld [vmem:[%s0 + $0x298] sm:$0xf]
    %v204 = vld [vmem:[%s0 + $0x29c] sm:$0xf]
    %v205 = vld [vmem:[%s0 + $0x2a0] sm:$0xf]
    %v206 = vld [vmem:[%s0 + $0x2a4] sm:$0xf]
    %v207 = vld [vmem:[%s0 + $0x2a8] sm:$0xf]
    %v208 = vld [vmem:[%s0 + $0x2ac] sm:$0xf]
    %v209 = vld [vmem:[%s0 + $0x2b0] sm:$0xf]
    %v210 = vld [vmem:[%s0 + $0x2b4] sm:$0xf]
    %v211 = vld [vmem:[%s0 + $0x2b8] sm:$0xf]
    %v212 = vld [vmem:[%s0 + $0x2bc] sm:$0xf]
    %v213 = vld [vmem:[%s0 + $0x2c0] sm:$0xf]
    %v214 = vld [vmem:[%s0 + $0x2c4] sm:$0xf]
    %v215 = vld [vmem:[%s0 + $0x2c8] sm:$0xf]
    %v216 = vld [vmem:[%s0 + $0x2cc] sm:$0xf]
    %v217 = vld [vmem:[%s0 + $0x2d0] sm:$0xf]
    %v218 = vld [vmem:[%s0 + $0x2d4] sm:$0xf]
    %v219 = vld [vmem:[%s0 + $0x2d8] sm:$0xf]
    %v220 = vld [vmem:[%s0 + $0x2dc] sm:$0xf]
    %v221 = vld [vmem:[%s0 + $0x2e0] sm:$0xf]
    %v222 = vld [vmem:[%s0 + $0x2e4] sm:$0xf]
    %v223 = vld [vmem:[%s0 + $0x2e8] sm:$0xf]
    %v224 = vld [vmem:[%s0 + $0x2ec] sm:$0xf]
    %v225 = vld [vmem:[%s0 + $0x2f0] sm:$0xf]
    %v226 = vld [vmem:[%s0 + $0x2f4] sm:$0xf]
    %v227 = vld [vmem:[%s0 + $0x2f8] sm:$0xf]
    %v228 = vld [vmem:[%s0 + $0x2fc] sm:$0xf]
    %v229 = vld [vmem:[%s0 + $0x300] sm:$0xf]
    %v230 = vld [vmem:[%s0 + $0x304] sm:$0xf]
    %v231 = vld [vmem:[%s0 + $0x308] sm:$0xf]
    %v232 = vld [vmem:[%s0 + $0x30c] sm:$0xf]
    %v233 = vld [vmem:[%s0 + $0x310] sm:$0xf]
    %v234 = vld [vmem:[%s0 + $0x314] sm:$0xf]
    %v235 = vld [vmem:[%s0 + $0x318] sm:$0xf]
    %v236 = vld [vmem:[%s0 + $0x31c] sm:$0xf]
    %v237 = vld [vmem:[%s0 + $0x320] sm:$0xf]
    %v238 = vld [vmem:[%s0 + $0x324] sm:$0xf]
    %v239 = vld [vmem:[%s0 + $0x328] sm:$0xf]
    %v240 = vld [vmem:[%s0 + $0x32c] sm:$0xf]
    %v241 = vld [vmem:[%s0 + $0x330] sm:$0xf]
    %v242 = vld [vmem:[%s0 + $0x334] sm:$0xf]
    %v243 = vld [vmem:[%s0 + $0x338] sm:$0xf]
    %v244 = vld [vmem:[%s0 + $0x33c] sm:$0xf]
    %v245 = vld [vmem:[%s0 + $0x340] sm:$0xf]
    %v246 = vld [vmem:[%s0 + $0x344] sm:$0xf]
    %v247 = vld [vmem:[%s0 + $0x348] sm:$0xf]
    %v248 = vld [vmem:[%s0 + $0x34c] sm:$0xf]
    %v249 = vld [vmem:[%s0 + $0x350] sm:$0xf]
    %v250 = vld [vmem:[%s0 + $0x354] sm:$0xf]
    %v251 = vld [vmem:[%s0 + $0x358] sm:$0xf]
    %v252 = vld [vmem:[%s0 + $0x35c] sm:$0xf]
    %v253 = vld [vmem:[%s0 + $0x360] sm:$0xf]
    %v254 = vld [vmem:[%s0 + $0x364] sm:$0xf]
    %v255 = vld [vmem:[%s0 + $0x368] sm:$0xf]
    %v256 = vld [vmem:[%s0 + $0x36c] sm:$0xf]
    %v257 = vld [vmem:[%s0 + $0x370] sm:$0xf]
    %v258 = vld [vmem:[%s0 + $0x374] sm:$0xf]
    %v259 = vld [vmem:[%s0 + $0x378] sm:$0xf]
    %v260 = vld [vmem:[%s0 + $0x37c] sm:$0xf]
    %v261 = vld [vmem:[%s0 + $0x380] sm:$0xf]
    %v262 = vld [vmem:[%s0 + $0x384] sm:$0xf]
    %v263 = vld [vmem:[%s0 + $0x388] sm:$0xf]
    %v264 = vld [vmem:[%s0 + $0x38c] sm:$0xf]
    %v265 = vld [vmem:[%s0 + $0x390] sm:$0xf]
    %v266 = vld [vmem:[%s0 + $0x394] sm:$0xf]
    %v267 = vld [vmem:[%s0 + $0x398] sm:$0xf]
    %v268 = vld [vmem:[%s0 + $0x39c] sm:$0xf]
    %v269 = vld [vmem:[%s0 + $0x3a0] sm:$0xf]
    %v270 = vld [vmem:[%s0 + $0x3a4] sm:$0xf]
    %v271 = vld [vmem:[%s0 + $0x3a8] sm:$0xf]
    %v272 = vld [vmem:[%s0 + $0x3ac] sm:$0xf]
    %v273 = vld [vmem:[%s0 + $0x3b0] sm:$0xf]
    %v274 = vld [vmem:[%s0 + $0x3b4] sm:$0xf]
    %v275 = vld [vmem:[%s0 + $0x3b8] sm:$0xf]
    %v276 = vld [vmem:[%s0 + $0x3bc] sm:$0xf]
    %v277 = vld [vmem:[%s0 + $0x3c0] sm:$0xf]
    %v278 = vld [vmem:[%s0 + $0x3c4] sm:$0xf]
    %v279 = vld [vmem:[%s0 + $0x3c8] sm:$0xf]
    %v280 = vld [vmem:[%s0 + $0x3cc] sm:$0xf]
    %v281 = vld [vmem:[%s0 + $0x3d0] sm:$0xf]
    %v282 = vld [vmem:[%s0 + $0x3d4] sm:$0xf]
    %v283 = vld [vmem:[%s0 + $0x3d8] sm:$0xf]
    %v284 = vld [vmem:[%s0 + $0x3dc] sm:$0xf]
    %v285 = vld [vmem:[%s0 + $0x3e0] sm:$0xf]
    %v286 = vld [vmem:[%s0 + $0x3e4] sm:$0xf]
    %v287 = vld [vmem:[%s0 + $0x3e8] sm:$0xf]
    %v288 = vld [vmem:[%s0 + $0x3ec] sm:$0xf]
    %v289 = vld [vmem:[%s0 + $0x3f0] sm:$0xf]
    %v290 = vld [vmem:[%s0 + $0x3f4] sm:$0xf]
    %v291 = vld [vmem:[%s0 + $0x3f8] sm:$0xf]
    %v292 = vld [vmem:[%s0 + $0x3fc] sm:$0xf]
    %v293 = vld [vmem:[%s1] sm:$0xff]
    %v294 = vld [vmem:[%s1 + $0x8] sm:$0xff]
    %v295 = vld [vmem:[%s1 + $0x10] sm:$0xff]
    %v296 = vld [vmem:[%s1 + $0x18] sm:$0xff]
    %v297 = vld [vmem:[%s1 + $0x20] sm:$0xff]
    %v298 = vld [vmem:[%s1 + $0x28] sm:$0xff]
    %v299 = vld [vmem:[%s1 + $0x30] sm:$0xff]
    %v300 = vld [vmem:[%s1 + $0x38] sm:$0xff]
    %v301 = vld [vmem:[%s1 + $0x40] sm:$0xff]
    %v302 = vld [vmem:[%s1 + $0x48] sm:$0xff]
    %v303 = vld [vmem:[%s1 + $0x50] sm:$0xff]
    %v304 = vld [vmem:[%s1 + $0x58] sm:$0xff]
    %v561 = vcombine.low %v37, %v38
    %v562 = vcombine.low %v39, %v40
    %v564 = vunpack.c.l.s4 1983009808
    %v565 = vunpack.c.0.s8 %v564
    %v566 = vlaneseq
    %v567 = vshrl.u32 %v566, 7
    %v568 = vsub.s32 %v565, %v567
    %v569 = vrot.slane %v561, %v568
    %v571 = vunpack.c.l.s4 1983009808
    %v572 = vunpack.c.0.s8 %v571
    %v573 = vlaneseq
    %v574 = vshrl.u32 %v573, 7
    %v575 = vsub.s32 %v572, %v574
    %v576 = vrot.slane %v562, %v575
    %v577 = vcombine.low %v569, %v576
    %v578 = vcombine.high %v569, %v576
    %v579 = vcombine.low %v41, %v42
    %v580 = vcombine.low %v43, %v44
    %v582 = vunpack.c.l.s4 1983009808
    %v583 = vunpack.c.0.s8 %v582
    %v584 = vlaneseq
    %v585 = vshrl.u32 %v584, 7
    %v586 = vsub.s32 %v583, %v585
    %v587 = vrot.slane %v579, %v586
    %v589 = vunpack.c.l.s4 1983009808
    %v590 = vunpack.c.0.s8 %v589
    %v591 = vlaneseq
    %v592 = vshrl.u32 %v591, 7
    %v593 = vsub.s32 %v590, %v592
    %v594 = vrot.slane %v580, %v593
    %v595 = vcombine.low %v587, %v594
    %v596 = vcombine.high %v587, %v594
    %v597 = vcombine.low %v45, %v46
    %v598 = vcombine.low %v47, %v48
    %v600 = vunpack.c.l.s4 1983009808
    %v601 = vunpack.c.0.s8 %v600
    %v602 = vlaneseq
    %v603 = vshrl.u32 %v602, 7
    %v604 = vsub.s32 %v601, %v603
    %v605 = vrot.slane %v597, %v604
    %v607 = vunpack.c.l.s4 1983009808
    %v608 = vunpack.c.0.s8 %v607
    %v609 = vlaneseq
    %v610 = vshrl.u32 %v609, 7
    %v611 = vsub.s32 %v608, %v610
    %v612 = vrot.slane %v598, %v611
    %v613 = vcombine.low %v605, %v612
    %v614 = vcombine.high %v605, %v612
    %v615 = vcombine.low %v49, %v50
    %v616 = vcombine.low %v51, %v52
    %v618 = vunpack.c.l.s4 1983009808
    %v619 = vunpack.c.0.s8 %v618
    %v620 = vlaneseq
    %v621 = vshrl.u32 %v620, 7
    %v622 = vsub.s32 %v619, %v621
    %v623 = vrot.slane %v615, %v622
    %v625 = vunpack.c.l.s4 1983009808
    %v626 = vunpack.c.0.s8 %v625
    %v627 = vlaneseq
    %v628 = vshrl.u32 %v627, 7
    %v629 = vsub.s32 %v626, %v628
    %v630 = vrot.slane %v616, %v629
    %v631 = vcombine.low %v623, %v630
    %v632 = vcombine.high %v623, %v630
    %v633 = vcombine.low %v53, %v54
    %v634 = vcombine.low %v55, %v56
    %v636 = vunpack.c.l.s4 1983009808
    %v637 = vunpack.c.0.s8 %v636
    %v638 = vlaneseq
    %v639 = vshrl.u32 %v638, 7
    %v640 = vsub.s32 %v637, %v639
    %v641 = vrot.slane %v633, %v640
    %v643 = vunpack.c.l.s4 1983009808
    %v644 = vunpack.c.0.s8 %v643
    %v645 = vlaneseq
    %v646 = vshrl.u32 %v645, 7
    %v647 = vsub.s32 %v644, %v646
    %v648 = vrot.slane %v634, %v647
    %v649 = vcombine.low %v641, %v648
    %v650 = vcombine.high %v641, %v648
    %v651 = vcombine.low %v57, %v58
    %v652 = vcombine.low %v59, %v60
    %v654 = vunpack.c.l.s4 1983009808
    %v655 = vunpack.c.0.s8 %v654
    %v656 = vlaneseq
    %v657 = vshrl.u32 %v656, 7
    %v658 = vsub.s32 %v655, %v657
    %v659 = vrot.slane %v651, %v658
    %v661 = vunpack.c.l.s4 1983009808
    %v662 = vunpack.c.0.s8 %v661
    %v663 = vlaneseq
    %v664 = vshrl.u32 %v663, 7
    %v665 = vsub.s32 %v662, %v664
    %v666 = vrot.slane %v652, %v665
    %v667 = vcombine.low %v659, %v666
    %v668 = vcombine.high %v659, %v666
    %v669 = vcombine.low %v61, %v62
    %v670 = vcombine.low %v63, %v64
    %v672 = vunpack.c.l.s4 1983009808
    %v673 = vunpack.c.0.s8 %v672
    %v674 = vlaneseq
    %v675 = vshrl.u32 %v674, 7
    %v676 = vsub.s32 %v673, %v675
    %v677 = vrot.slane %v669, %v676
    %v679 = vunpack.c.l.s4 1983009808
    %v680 = vunpack.c.0.s8 %v679
    %v681 = vlaneseq
    %v682 = vshrl.u32 %v681, 7
    %v683 = vsub.s32 %v680, %v682
    %v684 = vrot.slane %v670, %v683
    %v685 = vcombine.low %v677, %v684
    %v686 = vcombine.high %v677, %v684
    %v687 = vcombine.low %v65, %v66
    %v688 = vcombine.low %v67, %v68
    %v690 = vunpack.c.l.s4 1983009808
    %v691 = vunpack.c.0.s8 %v690
    %v692 = vlaneseq
    %v693 = vshrl.u32 %v692, 7
    %v694 = vsub.s32 %v691, %v693
    %v695 = vrot.slane %v687, %v694
    %v697 = vunpack.c.l.s4 1983009808
    %v698 = vunpack.c.0.s8 %v697
    %v699 = vlaneseq
    %v700 = vshrl.u32 %v699, 7
    %v701 = vsub.s32 %v698, %v700
    %v702 = vrot.slane %v688, %v701
    %v703 = vcombine.low %v695, %v702
    %v704 = vcombine.high %v695, %v702
    %v705 = vcombine.low %v69, %v70
    %v706 = vcombine.low %v71, %v72
    %v708 = vunpack.c.l.s4 1983009808
    %v709 = vunpack.c.0.s8 %v708
    %v710 = vlaneseq
    %v711 = vshrl.u32 %v710, 7
    %v712 = vsub.s32 %v709, %v711
    %v713 = vrot.slane %v705, %v712
    %v715 = vunpack.c.l.s4 1983009808
    %v716 = vunpack.c.0.s8 %v715
    %v717 = vlaneseq
    %v718 = vshrl.u32 %v717, 7
    %v719 = vsub.s32 %v716, %v718
    %v720 = vrot.slane %v706, %v719
    %v721 = vcombine.low %v713, %v720
    %v722 = vcombine.high %v713, %v720
    %v723 = vcombine.low %v73, %v74
    %v724 = vcombine.low %v75, %v76
    %v726 = vunpack.c.l.s4 1983009808
    %v727 = vunpack.c.0.s8 %v726
    %v728 = vlaneseq
    %v729 = vshrl.u32 %v728, 7
    %v730 = vsub.s32 %v727, %v729
    %v731 = vrot.slane %v723, %v730
    %v733 = vunpack.c.l.s4 1983009808
    %v734 = vunpack.c.0.s8 %v733
    %v735 = vlaneseq
    %v736 = vshrl.u32 %v735, 7
    %v737 = vsub.s32 %v734, %v736
    %v738 = vrot.slane %v724, %v737
    %v739 = vcombine.low %v731, %v738
    %v740 = vcombine.high %v731, %v738
    %v741 = vcombine.low %v77, %v78
    %v742 = vcombine.low %v79, %v80
    %v744 = vunpack.c.l.s4 1983009808
    %v745 = vunpack.c.0.s8 %v744
    %v746 = vlaneseq
    %v747 = vshrl.u32 %v746, 7
    %v748 = vsub.s32 %v745, %v747
    %v749 = vrot.slane %v741, %v748
    %v751 = vunpack.c.l.s4 1983009808
    %v752 = vunpack.c.0.s8 %v751
    %v753 = vlaneseq
    %v754 = vshrl.u32 %v753, 7
    %v755 = vsub.s32 %v752, %v754
    %v756 = vrot.slane %v742, %v755
    %v757 = vcombine.low %v749, %v756
    %v758 = vcombine.high %v749, %v756
    %v759 = vcombine.low %v81, %v82
    %v760 = vcombine.low %v83, %v84
    %v762 = vunpack.c.l.s4 1983009808
    %v763 = vunpack.c.0.s8 %v762
    %v764 = vlaneseq
    %v765 = vshrl.u32 %v764, 7
    %v766 = vsub.s32 %v763, %v765
    %v767 = vrot.slane %v759, %v766
    %v769 = vunpack.c.l.s4 1983009808
    %v770 = vunpack.c.0.s8 %v769
    %v771 = vlaneseq
    %v772 = vshrl.u32 %v771, 7
    %v773 = vsub.s32 %v770, %v772
    %v774 = vrot.slane %v760, %v773
    %v775 = vcombine.low %v767, %v774
    %v776 = vcombine.high %v767, %v774
    %v777 = vcombine.low %v85, %v86
    %v778 = vcombine.low %v87, %v88
    %v780 = vunpack.c.l.s4 1983009808
    %v781 = vunpack.c.0.s8 %v780
    %v782 = vlaneseq
    %v783 = vshrl.u32 %v782, 7
    %v784 = vsub.s32 %v781, %v783
    %v785 = vrot.slane %v777, %v784
    %v787 = vunpack.c.l.s4 1983009808
    %v788 = vunpack.c.0.s8 %v787
    %v789 = vlaneseq
    %v790 = vshrl.u32 %v789, 7
    %v791 = vsub.s32 %v788, %v790
    %v792 = vrot.slane %v778, %v791
    %v793 = vcombine.low %v785, %v792
    %v794 = vcombine.high %v785, %v792
    %v795 = vcombine.low %v89, %v90
    %v796 = vcombine.low %v91, %v92
    %v798 = vunpack.c.l.s4 1983009808
    %v799 = vunpack.c.0.s8 %v798
    %v800 = vlaneseq
    %v801 = vshrl.u32 %v800, 7
    %v802 = vsub.s32 %v799, %v801
    %v803 = vrot.slane %v795, %v802
    %v805 = vunpack.c.l.s4 1983009808
    %v806 = vunpack.c.0.s8 %v805
    %v807 = vlaneseq
    %v808 = vshrl.u32 %v807, 7
    %v809 = vsub.s32 %v806, %v808
    %v810 = vrot.slane %v796, %v809
    %v811 = vcombine.low %v803, %v810
    %v812 = vcombine.high %v803, %v810
    %v813 = vcombine.low %v93, %v94
    %v814 = vcombine.low %v95, %v96
    %v816 = vunpack.c.l.s4 1983009808
    %v817 = vunpack.c.0.s8 %v816
    %v818 = vlaneseq
    %v819 = vshrl.u32 %v818, 7
    %v820 = vsub.s32 %v817, %v819
    %v821 = vrot.slane %v813, %v820
    %v823 = vunpack.c.l.s4 1983009808
    %v824 = vunpack.c.0.s8 %v823
    %v825 = vlaneseq
    %v826 = vshrl.u32 %v825, 7
    %v827 = vsub.s32 %v824, %v826
    %v828 = vrot.slane %v814, %v827
    %v829 = vcombine.low %v821, %v828
    %v830 = vcombine.high %v821, %v828
    %v831 = vcombine.low %v97, %v98
    %v832 = vcombine.low %v99, %v100
    %v834 = vunpack.c.l.s4 1983009808
    %v835 = vunpack.c.0.s8 %v834
    %v836 = vlaneseq
    %v837 = vshrl.u32 %v836, 7
    %v838 = vsub.s32 %v835, %v837
    %v839 = vrot.slane %v831, %v838
    %v841 = vunpack.c.l.s4 1983009808
    %v842 = vunpack.c.0.s8 %v841
    %v843 = vlaneseq
    %v844 = vshrl.u32 %v843, 7
    %v845 = vsub.s32 %v842, %v844
    %v846 = vrot.slane %v832, %v845
    %v847 = vcombine.low %v839, %v846
    %v848 = vcombine.high %v839, %v846
    %v849 = vcombine.low %v101, %v102
    %v850 = vcombine.low %v103, %v104
    %v852 = vunpack.c.l.s4 1983009808
    %v853 = vunpack.c.0.s8 %v852
    %v854 = vlaneseq
    %v855 = vshrl.u32 %v854, 7
    %v856 = vsub.s32 %v853, %v855
    %v857 = vrot.slane %v849, %v856
    %v859 = vunpack.c.l.s4 1983009808
    %v860 = vunpack.c.0.s8 %v859
    %v861 = vlaneseq
    %v862 = vshrl.u32 %v861, 7
    %v863 = vsub.s32 %v860, %v862
    %v864 = vrot.slane %v850, %v863
    %v865 = vcombine.low %v857, %v864
    %v866 = vcombine.high %v857, %v864
    %v867 = vcombine.low %v105, %v106
    %v868 = vcombine.low %v107, %v108
    %v870 = vunpack.c.l.s4 1983009808
    %v871 = vunpack.c.0.s8 %v870
    %v872 = vlaneseq
    %v873 = vshrl.u32 %v872, 7
    %v874 = vsub.s32 %v871, %v873
    %v875 = vrot.slane %v867, %v874
    %v877 = vunpack.c.l.s4 1983009808
    %v878 = vunpack.c.0.s8 %v877
    %v879 = vlaneseq
    %v880 = vshrl.u32 %v879, 7
    %v881 = vsub.s32 %v878, %v880
    %v882 = vrot.slane %v868, %v881
    %v883 = vcombine.low %v875, %v882
    %v884 = vcombine.high %v875, %v882
    %v885 = vcombine.low %v109, %v110
    %v886 = vcombine.low %v111, %v112
    %v888 = vunpack.c.l.s4 1983009808
    %v889 = vunpack.c.0.s8 %v888
    %v890 = vlaneseq
    %v891 = vshrl.u32 %v890, 7
    %v892 = vsub.s32 %v889, %v891
    %v893 = vrot.slane %v885, %v892
    %v895 = vunpack.c.l.s4 1983009808
    %v896 = vunpack.c.0.s8 %v895
    %v897 = vlaneseq
    %v898 = vshrl.u32 %v897, 7
    %v899 = vsub.s32 %v896, %v898
    %v900 = vrot.slane %v886, %v899
    %v901 = vcombine.low %v893, %v900
    %v902 = vcombine.high %v893, %v900
    %v903 = vcombine.low %v113, %v114
    %v904 = vcombine.low %v115, %v116
    %v906 = vunpack.c.l.s4 1983009808
    %v907 = vunpack.c.0.s8 %v906
    %v908 = vlaneseq
    %v909 = vshrl.u32 %v908, 7
    %v910 = vsub.s32 %v907, %v909
    %v911 = vrot.slane %v903, %v910
    %v913 = vunpack.c.l.s4 1983009808
    %v914 = vunpack.c.0.s8 %v913
    %v915 = vlaneseq
    %v916 = vshrl.u32 %v915, 7
    %v917 = vsub.s32 %v914, %v916
    %v918 = vrot.slane %v904, %v917
    %v919 = vcombine.low %v911, %v918
    %v920 = vcombine.high %v911, %v918
    %v921 = vcombine.low %v117, %v118
    %v922 = vcombine.low %v119, %v120
    %v924 = vunpack.c.l.s4 1983009808
    %v925 = vunpack.c.0.s8 %v924
    %v926 = vlaneseq
    %v927 = vshrl.u32 %v926, 7
    %v928 = vsub.s32 %v925, %v927
    %v929 = vrot.slane %v921, %v928
    %v931 = vunpack.c.l.s4 1983009808
    %v932 = vunpack.c.0.s8 %v931
    %v933 = vlaneseq
    %v934 = vshrl.u32 %v933, 7
    %v935 = vsub.s32 %v932, %v934
    %v936 = vrot.slane %v922, %v935
    %v937 = vcombine.low %v929, %v936
    %v938 = vcombine.high %v929, %v936
    %v939 = vcombine.low %v121, %v122
    %v940 = vcombine.low %v123, %v124
    %v942 = vunpack.c.l.s4 1983009808
    %v943 = vunpack.c.0.s8 %v942
    %v944 = vlaneseq
    %v945 = vshrl.u32 %v944, 7
    %v946 = vsub.s32 %v943, %v945
    %v947 = vrot.slane %v939, %v946
    %v949 = vunpack.c.l.s4 1983009808
    %v950 = vunpack.c.0.s8 %v949
    %v951 = vlaneseq
    %v952 = vshrl.u32 %v951, 7
    %v953 = vsub.s32 %v950, %v952
    %v954 = vrot.slane %v940, %v953
    %v955 = vcombine.low %v947, %v954
    %v956 = vcombine.high %v947, %v954
    %v957 = vcombine.low %v125, %v126
    %v958 = vcombine.low %v127, %v128
    %v960 = vunpack.c.l.s4 1983009808
    %v961 = vunpack.c.0.s8 %v960
    %v962 = vlaneseq
    %v963 = vshrl.u32 %v962, 7
    %v964 = vsub.s32 %v961, %v963
    %v965 = vrot.slane %v957, %v964
    %v967 = vunpack.c.l.s4 1983009808
    %v968 = vunpack.c.0.s8 %v967
    %v969 = vlaneseq
    %v970 = vshrl.u32 %v969, 7
    %v971 = vsub.s32 %v968, %v970
    %v972 = vrot.slane %v958, %v971
    %v973 = vcombine.low %v965, %v972
    %v974 = vcombine.high %v965, %v972
    %v975 = vcombine.low %v129, %v130
    %v976 = vcombine.low %v131, %v132
    %v978 = vunpack.c.l.s4 1983009808
    %v979 = vunpack.c.0.s8 %v978
    %v980 = vlaneseq
    %v981 = vshrl.u32 %v980, 7
    %v982 = vsub.s32 %v979, %v981
    %v983 = vrot.slane %v975, %v982
    %v985 = vunpack.c.l.s4 1983009808
    %v986 = vunpack.c.0.s8 %v985
    %v987 = vlaneseq
    %v988 = vshrl.u32 %v987, 7
    %v989 = vsub.s32 %v986, %v988
    %v990 = vrot.slane %v976, %v989
    %v991 = vcombine.low %v983, %v990
    %v992 = vcombine.high %v983, %v990
    %v993 = vcombine.low %v133, %v134
    %v994 = vcombine.low %v135, %v136
    %v996 = vunpack.c.l.s4 1983009808
    %v997 = vunpack.c.0.s8 %v996
    %v998 = vlaneseq
    %v999 = vshrl.u32 %v998, 7
    %v1000 = vsub.s32 %v997, %v999
    %v1001 = vrot.slane %v993, %v1000
    %v1003 = vunpack.c.l.s4 1983009808
    %v1004 = vunpack.c.0.s8 %v1003
    %v1005 = vlaneseq
    %v1006 = vshrl.u32 %v1005, 7
    %v1007 = vsub.s32 %v1004, %v1006
    %v1008 = vrot.slane %v994, %v1007
    %v1009 = vcombine.low %v1001, %v1008
    %v1010 = vcombine.high %v1001, %v1008
    %v1011 = vcombine.low %v137, %v138
    %v1012 = vcombine.low %v139, %v140
    %v1014 = vunpack.c.l.s4 1983009808
    %v1015 = vunpack.c.0.s8 %v1014
    %v1016 = vlaneseq
    %v1017 = vshrl.u32 %v1016, 7
    %v1018 = vsub.s32 %v1015, %v1017
    %v1019 = vrot.slane %v1011, %v1018
    %v1021 = vunpack.c.l.s4 1983009808
    %v1022 = vunpack.c.0.s8 %v1021
    %v1023 = vlaneseq
    %v1024 = vshrl.u32 %v1023, 7
    %v1025 = vsub.s32 %v1022, %v1024
    %v1026 = vrot.slane %v1012, %v1025
    %v1027 = vcombine.low %v1019, %v1026
    %v1028 = vcombine.high %v1019, %v1026
    %v1029 = vcombine.low %v141, %v142
    %v1030 = vcombine.low %v143, %v144
    %v1032 = vunpack.c.l.s4 1983009808
    %v1033 = vunpack.c.0.s8 %v1032
    %v1034 = vlaneseq
    %v1035 = vshrl.u32 %v1034, 7
    %v1036 = vsub.s32 %v1033, %v1035
    %v1037 = vrot.slane %v1029, %v1036
    %v1039 = vunpack.c.l.s4 1983009808
    %v1040 = vunpack.c.0.s8 %v1039
    %v1041 = vlaneseq
    %v1042 = vshrl.u32 %v1041, 7
    %v1043 = vsub.s32 %v1040, %v1042
    %v1044 = vrot.slane %v1030, %v1043
    %v1045 = vcombine.low %v1037, %v1044
    %v1046 = vcombine.high %v1037, %v1044
    %v1047 = vcombine.low %v145, %v146
    %v1048 = vcombine.low %v147, %v148
    %v1050 = vunpack.c.l.s4 1983009808
    %v1051 = vunpack.c.0.s8 %v1050
    %v1052 = vlaneseq
    %v1053 = vshrl.u32 %v1052, 7
    %v1054 = vsub.s32 %v1051, %v1053
    %v1055 = vrot.slane %v1047, %v1054
    %v1057 = vunpack.c.l.s4 1983009808
    %v1058 = vunpack.c.0.s8 %v1057
    %v1059 = vlaneseq
    %v1060 = vshrl.u32 %v1059, 7
    %v1061 = vsub.s32 %v1058, %v1060
    %v1062 = vrot.slane %v1048, %v1061
    %v1063 = vcombine.low %v1055, %v1062
    %v1064 = vcombine.high %v1055, %v1062
    %v1065 = vcombine.low %v149, %v150
    %v1066 = vcombine.low %v151, %v152
    %v1068 = vunpack.c.l.s4 1983009808
    %v1069 = vunpack.c.0.s8 %v1068
    %v1070 = vlaneseq
    %v1071 = vshrl.u32 %v1070, 7
    %v1072 = vsub.s32 %v1069, %v1071
    %v1073 = vrot.slane %v1065, %v1072
    %v1075 = vunpack.c.l.s4 1983009808
    %v1076 = vunpack.c.0.s8 %v1075
    %v1077 = vlaneseq
    %v1078 = vshrl.u32 %v1077, 7
    %v1079 = vsub.s32 %v1076, %v1078
    %v1080 = vrot.slane %v1066, %v1079
    %v1081 = vcombine.low %v1073, %v1080
    %v1082 = vcombine.high %v1073, %v1080
    %v1083 = vcombine.low %v153, %v154
    %v1084 = vcombine.low %v155, %v156
    %v1086 = vunpack.c.l.s4 1983009808
    %v1087 = vunpack.c.0.s8 %v1086
    %v1088 = vlaneseq
    %v1089 = vshrl.u32 %v1088, 7
    %v1090 = vsub.s32 %v1087, %v1089
    %v1091 = vrot.slane %v1083, %v1090
    %v1093 = vunpack.c.l.s4 1983009808
    %v1094 = vunpack.c.0.s8 %v1093
    %v1095 = vlaneseq
    %v1096 = vshrl.u32 %v1095, 7
    %v1097 = vsub.s32 %v1094, %v1096
    %v1098 = vrot.slane %v1084, %v1097
    %v1099 = vcombine.low %v1091, %v1098
    %v1100 = vcombine.high %v1091, %v1098
    %v1101 = vcombine.low %v157, %v158
    %v1102 = vcombine.low %v159, %v160
    %v1104 = vunpack.c.l.s4 1983009808
    %v1105 = vunpack.c.0.s8 %v1104
    %v1106 = vlaneseq
    %v1107 = vshrl.u32 %v1106, 7
    %v1108 = vsub.s32 %v1105, %v1107
    %v1109 = vrot.slane %v1101, %v1108
    %v1111 = vunpack.c.l.s4 1983009808
    %v1112 = vunpack.c.0.s8 %v1111
    %v1113 = vlaneseq
    %v1114 = vshrl.u32 %v1113, 7
    %v1115 = vsub.s32 %v1112, %v1114
    %v1116 = vrot.slane %v1102, %v1115
    %v1117 = vcombine.low %v1109, %v1116
    %v1118 = vcombine.high %v1109, %v1116
    %v1119 = vcombine.low %v161, %v162
    %v1120 = vcombine.low %v163, %v164
    %v1122 = vunpack.c.l.s4 1983009808
    %v1123 = vunpack.c.0.s8 %v1122
    %v1124 = vlaneseq
    %v1125 = vshrl.u32 %v1124, 7
    %v1126 = vsub.s32 %v1123, %v1125
    %v1127 = vrot.slane %v1119, %v1126
    %v1129 = vunpack.c.l.s4 1983009808
    %v1130 = vunpack.c.0.s8 %v1129
    %v1131 = vlaneseq
    %v1132 = vshrl.u32 %v1131, 7
    %v1133 = vsub.s32 %v1130, %v1132
    %v1134 = vrot.slane %v1120, %v1133
    %v1135 = vcombine.low %v1127, %v1134
    %v1136 = vcombine.high %v1127, %v1134
    %v1137 = vcombine.low %v165, %v166
    %v1138 = vcombine.low %v167, %v168
    %v1140 = vunpack.c.l.s4 1983009808
    %v1141 = vunpack.c.0.s8 %v1140
    %v1142 = vlaneseq
    %v1143 = vshrl.u32 %v1142, 7
    %v1144 = vsub.s32 %v1141, %v1143
    %v1145 = vrot.slane %v1137, %v1144
    %v1147 = vunpack.c.l.s4 1983009808
    %v1148 = vunpack.c.0.s8 %v1147
    %v1149 = vlaneseq
    %v1150 = vshrl.u32 %v1149, 7
    %v1151 = vsub.s32 %v1148, %v1150
    %v1152 = vrot.slane %v1138, %v1151
    %v1153 = vcombine.low %v1145, %v1152
    %v1154 = vcombine.high %v1145, %v1152
    %v1155 = vcombine.low %v169, %v170
    %v1156 = vcombine.low %v171, %v172
    %v1158 = vunpack.c.l.s4 1983009808
    %v1159 = vunpack.c.0.s8 %v1158
    %v1160 = vlaneseq
    %v1161 = vshrl.u32 %v1160, 7
    %v1162 = vsub.s32 %v1159, %v1161
    %v1163 = vrot.slane %v1155, %v1162
    %v1165 = vunpack.c.l.s4 1983009808
    %v1166 = vunpack.c.0.s8 %v1165
    %v1167 = vlaneseq
    %v1168 = vshrl.u32 %v1167, 7
    %v1169 = vsub.s32 %v1166, %v1168
    %v1170 = vrot.slane %v1156, %v1169
    %v1171 = vcombine.low %v1163, %v1170
    %v1172 = vcombine.high %v1163, %v1170
    %v1173 = vcombine.low %v173, %v174
    %v1174 = vcombine.low %v175, %v176
    %v1176 = vunpack.c.l.s4 1983009808
    %v1177 = vunpack.c.0.s8 %v1176
    %v1178 = vlaneseq
    %v1179 = vshrl.u32 %v1178, 7
    %v1180 = vsub.s32 %v1177, %v1179
    %v1181 = vrot.slane %v1173, %v1180
    %v1183 = vunpack.c.l.s4 1983009808
    %v1184 = vunpack.c.0.s8 %v1183
    %v1185 = vlaneseq
    %v1186 = vshrl.u32 %v1185, 7
    %v1187 = vsub.s32 %v1184, %v1186
    %v1188 = vrot.slane %v1174, %v1187
    %v1189 = vcombine.low %v1181, %v1188
    %v1190 = vcombine.high %v1181, %v1188
    %v1191 = vcombine.low %v177, %v178
    %v1192 = vcombine.low %v179, %v180
    %v1194 = vunpack.c.l.s4 1983009808
    %v1195 = vunpack.c.0.s8 %v1194
    %v1196 = vlaneseq
    %v1197 = vshrl.u32 %v1196, 7
    %v1198 = vsub.s32 %v1195, %v1197
    %v1199 = vrot.slane %v1191, %v1198
    %v1201 = vunpack.c.l.s4 1983009808
    %v1202 = vunpack.c.0.s8 %v1201
    %v1203 = vlaneseq
    %v1204 = vshrl.u32 %v1203, 7
    %v1205 = vsub.s32 %v1202, %v1204
    %v1206 = vrot.slane %v1192, %v1205
    %v1207 = vcombine.low %v1199, %v1206
    %v1208 = vcombine.high %v1199, %v1206
    %v1209 = vcombine.low %v181, %v182
    %v1210 = vcombine.low %v183, %v184
    %v1212 = vunpack.c.l.s4 1983009808
    %v1213 = vunpack.c.0.s8 %v1212
    %v1214 = vlaneseq
    %v1215 = vshrl.u32 %v1214, 7
    %v1216 = vsub.s32 %v1213, %v1215
    %v1217 = vrot.slane %v1209, %v1216
    %v1219 = vunpack.c.l.s4 1983009808
    %v1220 = vunpack.c.0.s8 %v1219
    %v1221 = vlaneseq
    %v1222 = vshrl.u32 %v1221, 7
    %v1223 = vsub.s32 %v1220, %v1222
    %v1224 = vrot.slane %v1210, %v1223
    %v1225 = vcombine.low %v1217, %v1224
    %v1226 = vcombine.high %v1217, %v1224
    %v1227 = vcombine.low %v185, %v186
    %v1228 = vcombine.low %v187, %v188
    %v1230 = vunpack.c.l.s4 1983009808
    %v1231 = vunpack.c.0.s8 %v1230
    %v1232 = vlaneseq
    %v1233 = vshrl.u32 %v1232, 7
    %v1234 = vsub.s32 %v1231, %v1233
    %v1235 = vrot.slane %v1227, %v1234
    %v1237 = vunpack.c.l.s4 1983009808
    %v1238 = vunpack.c.0.s8 %v1237
    %v1239 = vlaneseq
    %v1240 = vshrl.u32 %v1239, 7
    %v1241 = vsub.s32 %v1238, %v1240
    %v1242 = vrot.slane %v1228, %v1241
    %v1243 = vcombine.low %v1235, %v1242
    %v1244 = vcombine.high %v1235, %v1242
    %v1245 = vcombine.low %v189, %v190
    %v1246 = vcombine.low %v191, %v192
    %v1248 = vunpack.c.l.s4 1983009808
    %v1249 = vunpack.c.0.s8 %v1248
    %v1250 = vlaneseq
    %v1251 = vshrl.u32 %v1250, 7
    %v1252 = vsub.s32 %v1249, %v1251
    %v1253 = vrot.slane %v1245, %v1252
    %v1255 = vunpack.c.l.s4 1983009808
    %v1256 = vunpack.c.0.s8 %v1255
    %v1257 = vlaneseq
    %v1258 = vshrl.u32 %v1257, 7
    %v1259 = vsub.s32 %v1256, %v1258
    %v1260 = vrot.slane %v1246, %v1259
    %v1261 = vcombine.low %v1253, %v1260
    %v1262 = vcombine.high %v1253, %v1260
    %v1263 = vcombine.low %v193, %v194
    %v1264 = vcombine.low %v195, %v196
    %v1266 = vunpack.c.l.s4 1983009808
    %v1267 = vunpack.c.0.s8 %v1266
    %v1268 = vlaneseq
    %v1269 = vshrl.u32 %v1268, 7
    %v1270 = vsub.s32 %v1267, %v1269
    %v1271 = vrot.slane %v1263, %v1270
    %v1273 = vunpack.c.l.s4 1983009808
    %v1274 = vunpack.c.0.s8 %v1273
    %v1275 = vlaneseq
    %v1276 = vshrl.u32 %v1275, 7
    %v1277 = vsub.s32 %v1274, %v1276
    %v1278 = vrot.slane %v1264, %v1277
    %v1279 = vcombine.low %v1271, %v1278
    %v1280 = vcombine.high %v1271, %v1278
    %v1281 = vcombine.low %v197, %v198
    %v1282 = vcombine.low %v199, %v200
    %v1284 = vunpack.c.l.s4 1983009808
    %v1285 = vunpack.c.0.s8 %v1284
    %v1286 = vlaneseq
    %v1287 = vshrl.u32 %v1286, 7
    %v1288 = vsub.s32 %v1285, %v1287
    %v1289 = vrot.slane %v1281, %v1288
    %v1291 = vunpack.c.l.s4 1983009808
    %v1292 = vunpack.c.0.s8 %v1291
    %v1293 = vlaneseq
    %v1294 = vshrl.u32 %v1293, 7
    %v1295 = vsub.s32 %v1292, %v1294
    %v1296 = vrot.slane %v1282, %v1295
    %v1297 = vcombine.low %v1289, %v1296
    %v1298 = vcombine.high %v1289, %v1296
    %v1299 = vcombine.low %v201, %v202
    %v1300 = vcombine.low %v203, %v204
    %v1302 = vunpack.c.l.s4 1983009808
    %v1303 = vunpack.c.0.s8 %v1302
    %v1304 = vlaneseq
    %v1305 = vshrl.u32 %v1304, 7
    %v1306 = vsub.s32 %v1303, %v1305
    %v1307 = vrot.slane %v1299, %v1306
    %v1309 = vunpack.c.l.s4 1983009808
    %v1310 = vunpack.c.0.s8 %v1309
    %v1311 = vlaneseq
    %v1312 = vshrl.u32 %v1311, 7
    %v1313 = vsub.s32 %v1310, %v1312
    %v1314 = vrot.slane %v1300, %v1313
    %v1315 = vcombine.low %v1307, %v1314
    %v1316 = vcombine.high %v1307, %v1314
    %v1317 = vcombine.low %v205, %v206
    %v1318 = vcombine.low %v207, %v208
    %v1320 = vunpack.c.l.s4 1983009808
    %v1321 = vunpack.c.0.s8 %v1320
    %v1322 = vlaneseq
    %v1323 = vshrl.u32 %v1322, 7
    %v1324 = vsub.s32 %v1321, %v1323
    %v1325 = vrot.slane %v1317, %v1324
    %v1327 = vunpack.c.l.s4 1983009808
    %v1328 = vunpack.c.0.s8 %v1327
    %v1329 = vlaneseq
    %v1330 = vshrl.u32 %v1329, 7
    %v1331 = vsub.s32 %v1328, %v1330
    %v1332 = vrot.slane %v1318, %v1331
    %v1333 = vcombine.low %v1325, %v1332
    %v1334 = vcombine.high %v1325, %v1332
    %v1335 = vcombine.low %v209, %v210
    %v1336 = vcombine.low %v211, %v212
    %v1338 = vunpack.c.l.s4 1983009808
    %v1339 = vunpack.c.0.s8 %v1338
    %v1340 = vlaneseq
    %v1341 = vshrl.u32 %v1340, 7
    %v1342 = vsub.s32 %v1339, %v1341
    %v1343 = vrot.slane %v1335, %v1342
    %v1345 = vunpack.c.l.s4 1983009808
    %v1346 = vunpack.c.0.s8 %v1345
    %v1347 = vlaneseq
    %v1348 = vshrl.u32 %v1347, 7
    %v1349 = vsub.s32 %v1346, %v1348
    %v1350 = vrot.slane %v1336, %v1349
    %v1351 = vcombine.low %v1343, %v1350
    %v1352 = vcombine.high %v1343, %v1350
    %v1353 = vcombine.low %v213, %v214
    %v1354 = vcombine.low %v215, %v216
    %v1356 = vunpack.c.l.s4 1983009808
    %v1357 = vunpack.c.0.s8 %v1356
    %v1358 = vlaneseq
    %v1359 = vshrl.u32 %v1358, 7
    %v1360 = vsub.s32 %v1357, %v1359
    %v1361 = vrot.slane %v1353, %v1360
    %v1363 = vunpack.c.l.s4 1983009808
    %v1364 = vunpack.c.0.s8 %v1363
    %v1365 = vlaneseq
    %v1366 = vshrl.u32 %v1365, 7
    %v1367 = vsub.s32 %v1364, %v1366
    %v1368 = vrot.slane %v1354, %v1367
    %v1369 = vcombine.low %v1361, %v1368
    %v1370 = vcombine.high %v1361, %v1368
    %v1371 = vcombine.low %v217, %v218
    %v1372 = vcombine.low %v219, %v220
    %v1374 = vunpack.c.l.s4 1983009808
    %v1375 = vunpack.c.0.s8 %v1374
    %v1376 = vlaneseq
    %v1377 = vshrl.u32 %v1376, 7
    %v1378 = vsub.s32 %v1375, %v1377
    %v1379 = vrot.slane %v1371, %v1378
    %v1381 = vunpack.c.l.s4 1983009808
    %v1382 = vunpack.c.0.s8 %v1381
    %v1383 = vlaneseq
    %v1384 = vshrl.u32 %v1383, 7
    %v1385 = vsub.s32 %v1382, %v1384
    %v1386 = vrot.slane %v1372, %v1385
    %v1387 = vcombine.low %v1379, %v1386
    %v1388 = vcombine.high %v1379, %v1386
    %v1389 = vcombine.low %v221, %v222
    %v1390 = vcombine.low %v223, %v224
    %v1392 = vunpack.c.l.s4 1983009808
    %v1393 = vunpack.c.0.s8 %v1392
    %v1394 = vlaneseq
    %v1395 = vshrl.u32 %v1394, 7
    %v1396 = vsub.s32 %v1393, %v1395
    %v1397 = vrot.slane %v1389, %v1396
    %v1399 = vunpack.c.l.s4 1983009808
    %v1400 = vunpack.c.0.s8 %v1399
    %v1401 = vlaneseq
    %v1402 = vshrl.u32 %v1401, 7
    %v1403 = vsub.s32 %v1400, %v1402
    %v1404 = vrot.slane %v1390, %v1403
    %v1405 = vcombine.low %v1397, %v1404
    %v1406 = vcombine.high %v1397, %v1404
    %v1407 = vcombine.low %v225, %v226
    %v1408 = vcombine.low %v227, %v228
    %v1410 = vunpack.c.l.s4 1983009808
    %v1411 = vunpack.c.0.s8 %v1410
    %v1412 = vlaneseq
    %v1413 = vshrl.u32 %v1412, 7
    %v1414 = vsub.s32 %v1411, %v1413
    %v1415 = vrot.slane %v1407, %v1414
    %v1417 = vunpack.c.l.s4 1983009808
    %v1418 = vunpack.c.0.s8 %v1417
    %v1419 = vlaneseq
    %v1420 = vshrl.u32 %v1419, 7
    %v1421 = vsub.s32 %v1418, %v1420
    %v1422 = vrot.slane %v1408, %v1421
    %v1423 = vcombine.low %v1415, %v1422
    %v1424 = vcombine.high %v1415, %v1422
    %v1425 = vcombine.low %v229, %v230
    %v1426 = vcombine.low %v231, %v232
    %v1428 = vunpack.c.l.s4 1983009808
    %v1429 = vunpack.c.0.s8 %v1428
    %v1430 = vlaneseq
    %v1431 = vshrl.u32 %v1430, 7
    %v1432 = vsub.s32 %v1429, %v1431
    %v1433 = vrot.slane %v1425, %v1432
    %v1435 = vunpack.c.l.s4 1983009808
    %v1436 = vunpack.c.0.s8 %v1435
    %v1437 = vlaneseq
    %v1438 = vshrl.u32 %v1437, 7
    %v1439 = vsub.s32 %v1436, %v1438
    %v1440 = vrot.slane %v1426, %v1439
    %v1441 = vcombine.low %v1433, %v1440
    %v1442 = vcombine.high %v1433, %v1440
    %v1443 = vcombine.low %v233, %v234
    %v1444 = vcombine.low %v235, %v236
    %v1446 = vunpack.c.l.s4 1983009808
    %v1447 = vunpack.c.0.s8 %v1446
    %v1448 = vlaneseq
    %v1449 = vshrl.u32 %v1448, 7
    %v1450 = vsub.s32 %v1447, %v1449
    %v1451 = vrot.slane %v1443, %v1450
    %v1453 = vunpack.c.l.s4 1983009808
    %v1454 = vunpack.c.0.s8 %v1453
    %v1455 = vlaneseq
    %v1456 = vshrl.u32 %v1455, 7
    %v1457 = vsub.s32 %v1454, %v1456
    %v1458 = vrot.slane %v1444, %v1457
    %v1459 = vcombine.low %v1451, %v1458
    %v1460 = vcombine.high %v1451, %v1458
    %v1461 = vcombine.low %v237, %v238
    %v1462 = vcombine.low %v239, %v240
    %v1464 = vunpack.c.l.s4 1983009808
    %v1465 = vunpack.c.0.s8 %v1464
    %v1466 = vlaneseq
    %v1467 = vshrl.u32 %v1466, 7
    %v1468 = vsub.s32 %v1465, %v1467
    %v1469 = vrot.slane %v1461, %v1468
    %v1471 = vunpack.c.l.s4 1983009808
    %v1472 = vunpack.c.0.s8 %v1471
    %v1473 = vlaneseq
    %v1474 = vshrl.u32 %v1473, 7
    %v1475 = vsub.s32 %v1472, %v1474
    %v1476 = vrot.slane %v1462, %v1475
    %v1477 = vcombine.low %v1469, %v1476
    %v1478 = vcombine.high %v1469, %v1476
    %v1479 = vcombine.low %v241, %v242
    %v1480 = vcombine.low %v243, %v244
    %v1482 = vunpack.c.l.s4 1983009808
    %v1483 = vunpack.c.0.s8 %v1482
    %v1484 = vlaneseq
    %v1485 = vshrl.u32 %v1484, 7
    %v1486 = vsub.s32 %v1483, %v1485
    %v1487 = vrot.slane %v1479, %v1486
    %v1489 = vunpack.c.l.s4 1983009808
    %v1490 = vunpack.c.0.s8 %v1489
    %v1491 = vlaneseq
    %v1492 = vshrl.u32 %v1491, 7
    %v1493 = vsub.s32 %v1490, %v1492
    %v1494 = vrot.slane %v1480, %v1493
    %v1495 = vcombine.low %v1487, %v1494
    %v1496 = vcombine.high %v1487, %v1494
    %v1497 = vcombine.low %v245, %v246
    %v1498 = vcombine.low %v247, %v248
    %v1500 = vunpack.c.l.s4 1983009808
    %v1501 = vunpack.c.0.s8 %v1500
    %v1502 = vlaneseq
    %v1503 = vshrl.u32 %v1502, 7
    %v1504 = vsub.s32 %v1501, %v1503
    %v1505 = vrot.slane %v1497, %v1504
    %v1507 = vunpack.c.l.s4 1983009808
    %v1508 = vunpack.c.0.s8 %v1507
    %v1509 = vlaneseq
    %v1510 = vshrl.u32 %v1509, 7
    %v1511 = vsub.s32 %v1508, %v1510
    %v1512 = vrot.slane %v1498, %v1511
    %v1513 = vcombine.low %v1505, %v1512
    %v1514 = vcombine.high %v1505, %v1512
    %v1515 = vcombine.low %v249, %v250
    %v1516 = vcombine.low %v251, %v252
    %v1518 = vunpack.c.l.s4 1983009808
    %v1519 = vunpack.c.0.s8 %v1518
    %v1520 = vlaneseq
    %v1521 = vshrl.u32 %v1520, 7
    %v1522 = vsub.s32 %v1519, %v1521
    %v1523 = vrot.slane %v1515, %v1522
    %v1525 = vunpack.c.l.s4 1983009808
    %v1526 = vunpack.c.0.s8 %v1525
    %v1527 = vlaneseq
    %v1528 = vshrl.u32 %v1527, 7
    %v1529 = vsub.s32 %v1526, %v1528
    %v1530 = vrot.slane %v1516, %v1529
    %v1531 = vcombine.low %v1523, %v1530
    %v1532 = vcombine.high %v1523, %v1530
    %v1533 = vcombine.low %v253, %v254
    %v1534 = vcombine.low %v255, %v256
    %v1536 = vunpack.c.l.s4 1983009808
    %v1537 = vunpack.c.0.s8 %v1536
    %v1538 = vlaneseq
    %v1539 = vshrl.u32 %v1538, 7
    %v1540 = vsub.s32 %v1537, %v1539
    %v1541 = vrot.slane %v1533, %v1540
    %v1543 = vunpack.c.l.s4 1983009808
    %v1544 = vunpack.c.0.s8 %v1543
    %v1545 = vlaneseq
    %v1546 = vshrl.u32 %v1545, 7
    %v1547 = vsub.s32 %v1544, %v1546
    %v1548 = vrot.slane %v1534, %v1547
    %v1549 = vcombine.low %v1541, %v1548
    %v1550 = vcombine.high %v1541, %v1548
    %v1551 = vcombine.low %v257, %v258
    %v1552 = vcombine.low %v259, %v260
    %v1554 = vunpack.c.l.s4 1983009808
    %v1555 = vunpack.c.0.s8 %v1554
    %v1556 = vlaneseq
    %v1557 = vshrl.u32 %v1556, 7
    %v1558 = vsub.s32 %v1555, %v1557
    %v1559 = vrot.slane %v1551, %v1558
    %v1561 = vunpack.c.l.s4 1983009808
    %v1562 = vunpack.c.0.s8 %v1561
    %v1563 = vlaneseq
    %v1564 = vshrl.u32 %v1563, 7
    %v1565 = vsub.s32 %v1562, %v1564
    %v1566 = vrot.slane %v1552, %v1565
    %v1567 = vcombine.low %v1559, %v1566
    %v1568 = vcombine.high %v1559, %v1566
    %v1569 = vcombine.low %v261, %v262
    %v1570 = vcombine.low %v263, %v264
    %v1572 = vunpack.c.l.s4 1983009808
    %v1573 = vunpack.c.0.s8 %v1572
    %v1574 = vlaneseq
    %v1575 = vshrl.u32 %v1574, 7
    %v1576 = vsub.s32 %v1573, %v1575
    %v1577 = vrot.slane %v1569, %v1576
    %v1579 = vunpack.c.l.s4 1983009808
    %v1580 = vunpack.c.0.s8 %v1579
    %v1581 = vlaneseq
    %v1582 = vshrl.u32 %v1581, 7
    %v1583 = vsub.s32 %v1580, %v1582
    %v1584 = vrot.slane %v1570, %v1583
    %v1585 = vcombine.low %v1577, %v1584
    %v1586 = vcombine.high %v1577, %v1584
    %v1587 = vcombine.low %v265, %v266
    %v1588 = vcombine.low %v267, %v268
    %v1590 = vunpack.c.l.s4 1983009808
    %v1591 = vunpack.c.0.s8 %v1590
    %v1592 = vlaneseq
    %v1593 = vshrl.u32 %v1592, 7
    %v1594 = vsub.s32 %v1591, %v1593
    %v1595 = vrot.slane %v1587, %v1594
    %v1597 = vunpack.c.l.s4 1983009808
    %v1598 = vunpack.c.0.s8 %v1597
    %v1599 = vlaneseq
    %v1600 = vshrl.u32 %v1599, 7
    %v1601 = vsub.s32 %v1598, %v1600
    %v1602 = vrot.slane %v1588, %v1601
    %v1603 = vcombine.low %v1595, %v1602
    %v1604 = vcombine.high %v1595, %v1602
    %v1605 = vcombine.low %v269, %v270
    %v1606 = vcombine.low %v271, %v272
    %v1608 = vunpack.c.l.s4 1983009808
    %v1609 = vunpack.c.0.s8 %v1608
    %v1610 = vlaneseq
    %v1611 = vshrl.u32 %v1610, 7
    %v1612 = vsub.s32 %v1609, %v1611
    %v1613 = vrot.slane %v1605, %v1612
    %v1615 = vunpack.c.l.s4 1983009808
    %v1616 = vunpack.c.0.s8 %v1615
    %v1617 = vlaneseq
    %v1618 = vshrl.u32 %v1617, 7
    %v1619 = vsub.s32 %v1616, %v1618
    %v1620 = vrot.slane %v1606, %v1619
    %v1621 = vcombine.low %v1613, %v1620
    %v1622 = vcombine.high %v1613, %v1620
    %v1623 = vcombine.low %v273, %v274
    %v1624 = vcombine.low %v275, %v276
    %v1626 = vunpack.c.l.s4 1983009808
    %v1627 = vunpack.c.0.s8 %v1626
    %v1628 = vlaneseq
    %v1629 = vshrl.u32 %v1628, 7
    %v1630 = vsub.s32 %v1627, %v1629
    %v1631 = vrot.slane %v1623, %v1630
    %v1633 = vunpack.c.l.s4 1983009808
    %v1634 = vunpack.c.0.s8 %v1633
    %v1635 = vlaneseq
    %v1636 = vshrl.u32 %v1635, 7
    %v1637 = vsub.s32 %v1634, %v1636
    %v1638 = vrot.slane %v1624, %v1637
    %v1639 = vcombine.low %v1631, %v1638
    %v1640 = vcombine.high %v1631, %v1638
    %v1641 = vcombine.low %v277, %v278
    %v1642 = vcombine.low %v279, %v280
    %v1644 = vunpack.c.l.s4 1983009808
    %v1645 = vunpack.c.0.s8 %v1644
    %v1646 = vlaneseq
    %v1647 = vshrl.u32 %v1646, 7
    %v1648 = vsub.s32 %v1645, %v1647
    %v1649 = vrot.slane %v1641, %v1648
    %v1651 = vunpack.c.l.s4 1983009808
    %v1652 = vunpack.c.0.s8 %v1651
    %v1653 = vlaneseq
    %v1654 = vshrl.u32 %v1653, 7
    %v1655 = vsub.s32 %v1652, %v1654
    %v1656 = vrot.slane %v1642, %v1655
    %v1657 = vcombine.low %v1649, %v1656
    %v1658 = vcombine.high %v1649, %v1656
    %v1659 = vcombine.low %v281, %v282
    %v1660 = vcombine.low %v283, %v284
    %v1662 = vunpack.c.l.s4 1983009808
    %v1663 = vunpack.c.0.s8 %v1662
    %v1664 = vlaneseq
    %v1665 = vshrl.u32 %v1664, 7
    %v1666 = vsub.s32 %v1663, %v1665
    %v1667 = vrot.slane %v1659, %v1666
    %v1669 = vunpack.c.l.s4 1983009808
    %v1670 = vunpack.c.0.s8 %v1669
    %v1671 = vlaneseq
    %v1672 = vshrl.u32 %v1671, 7
    %v1673 = vsub.s32 %v1670, %v1672
    %v1674 = vrot.slane %v1660, %v1673
    %v1675 = vcombine.low %v1667, %v1674
    %v1676 = vcombine.high %v1667, %v1674
    %v1677 = vcombine.low %v285, %v286
    %v1678 = vcombine.low %v287, %v288
    %v1680 = vunpack.c.l.s4 1983009808
    %v1681 = vunpack.c.0.s8 %v1680
    %v1682 = vlaneseq
    %v1683 = vshrl.u32 %v1682, 7
    %v1684 = vsub.s32 %v1681, %v1683
    %v1685 = vrot.slane %v1677, %v1684
    %v1687 = vunpack.c.l.s4 1983009808
    %v1688 = vunpack.c.0.s8 %v1687
    %v1689 = vlaneseq
    %v1690 = vshrl.u32 %v1689, 7
    %v1691 = vsub.s32 %v1688, %v1690
    %v1692 = vrot.slane %v1678, %v1691
    %v1693 = vcombine.low %v1685, %v1692
    %v1694 = vcombine.high %v1685, %v1692
    %v1695 = vcombine.low %v289, %v290
    %v1696 = vcombine.low %v291, %v292
    %v1698 = vunpack.c.l.s4 1983009808
    %v1699 = vunpack.c.0.s8 %v1698
    %v1700 = vlaneseq
    %v1701 = vshrl.u32 %v1700, 7
    %v1702 = vsub.s32 %v1699, %v1701
    %v1703 = vrot.slane %v1695, %v1702
    %v1705 = vunpack.c.l.s4 1983009808
    %v1706 = vunpack.c.0.s8 %v1705
    %v1707 = vlaneseq
    %v1708 = vshrl.u32 %v1707, 7
    %v1709 = vsub.s32 %v1706, %v1708
    %v1710 = vrot.slane %v1696, %v1709
    %v1711 = vcombine.low %v1703, %v1710
    %v1712 = vcombine.high %v1703, %v1710
    %vm1777 = vcmask 547840
    %v1779 = vsel %vm1777, %v294, 0
    %v1782 = vsel %vm1777, %v296, 0
    %v1785 = vsel %vm1777, %v298, 0
    %v1788 = vsel %vm1777, %v300, 0
    %v1791 = vsel %vm1777, %v302, 0
    %v1794 = vsel %vm1777, %v304, 0
    %v1796 = vsel %vm1777, %v578, 0
    %v1798 = vsel %vm1777, %v596, 0
    %v1800 = vsel %vm1777, %v614, 0
    %v1802 = vsel %vm1777, %v632, 0
    %v1804 = vsel %vm1777, %v650, 0
    %v1806 = vsel %vm1777, %v668, 0
    %v1808 = vsel %vm1777, %v686, 0
    %v1810 = vsel %vm1777, %v704, 0
    %v1812 = vsel %vm1777, %v722, 0
    %v1814 = vsel %vm1777, %v740, 0
    %v1816 = vsel %vm1777, %v758, 0
    %v1818 = vsel %vm1777, %v776, 0
    %v1820 = vsel %vm1777, %v794, 0
    %v1822 = vsel %vm1777, %v812, 0
    %v1824 = vsel %vm1777, %v830, 0
    %v1826 = vsel %vm1777, %v848, 0
    %v1828 = vsel %vm1777, %v866, 0
    %v1830 = vsel %vm1777, %v884, 0
    %v1832 = vsel %vm1777, %v902, 0
    %v1834 = vsel %vm1777, %v920, 0
    %v1836 = vsel %vm1777, %v938, 0
    %v1838 = vsel %vm1777, %v956, 0
    %v1840 = vsel %vm1777, %v974, 0
    %v1842 = vsel %vm1777, %v992, 0
    %v1844 = vsel %vm1777, %v1010, 0
    %v1846 = vsel %vm1777, %v1028, 0
    %v1848 = vsel %vm1777, %v1046, 0
    %v1850 = vsel %vm1777, %v1064, 0
    %v1852 = vsel %vm1777, %v1082, 0
    %v1854 = vsel %vm1777, %v1100, 0
    %v1856 = vsel %vm1777, %v1118, 0
    %v1858 = vsel %vm1777, %v1136, 0
    %v1860 = vsel %vm1777, %v1154, 0
    %v1862 = vsel %vm1777, %v1172, 0
    %v1864 = vsel %vm1777, %v1190, 0
    %v1866 = vsel %vm1777, %v1208, 0
    %v1868 = vsel %vm1777, %v1226, 0
    %v1870 = vsel %vm1777, %v1244, 0
    %v1872 = vsel %vm1777, %v1262, 0
    %v1874 = vsel %vm1777, %v1280, 0
    %v1876 = vsel %vm1777, %v1298, 0
    %v1878 = vsel %vm1777, %v1316, 0
    %v1880 = vsel %vm1777, %v1334, 0
    %v1882 = vsel %vm1777, %v1352, 0
    %v1884 = vsel %vm1777, %v1370, 0
    %v1886 = vsel %vm1777, %v1388, 0
    %v1888 = vsel %vm1777, %v1406, 0
    %v1890 = vsel %vm1777, %v1424, 0
    %v1892 = vsel %vm1777, %v1442, 0
    %v1894 = vsel %vm1777, %v1460, 0
    %v1896 = vsel %vm1777, %v1478, 0
    %v1898 = vsel %vm1777, %v1496, 0
    %v1900 = vsel %vm1777, %v1514, 0
    %v1902 = vsel %vm1777, %v1532, 0
    %v1904 = vsel %vm1777, %v1550, 0
    %v1906 = vsel %vm1777, %v1568, 0
    %v1908 = vsel %vm1777, %v1586, 0
    %v1910 = vsel %vm1777, %v1604, 0
    %v1912 = vsel %vm1777, %v1622, 0
    %v1914 = vsel %vm1777, %v1640, 0
    %v1916 = vsel %vm1777, %v1658, 0
    %v1918 = vsel %vm1777, %v1676, 0
    %v1920 = vsel %vm1777, %v1694, 0
    %v1922 = vsel %vm1777, %v1712, 0
    %1924 = vmatprep.subr.mxu0 %v1826
    %1925 = vmatpush1.xpose.msra.mxu0 %v847
    %1926 = vmatprep.subr.mxu0 %v1824
    %1927 = vmatpush1.xpose.msra.mxu0 %v829
    %1928 = vmatprep.subr.mxu0 %v1822
    %1929 = vmatpush1.xpose.msra.mxu0 %v811
    %1930 = vmatprep.subr.mxu0 %v1820
    %1931 = vmatpush1.xpose.msra.mxu0 %v793
    %1932 = vmatprep.subr.mxu0 %v1818
    %1933 = vmatpush1.xpose.msra.mxu0 %v775
    %1934 = vmatprep.subr.mxu0 %v1816
    %1935 = vmatpush1.xpose.msra.mxu0 %v757
    %1936 = vmatprep.subr.mxu0 %v1814
    %1937 = vmatpush1.xpose.msra.mxu0 %v739
    %1938 = vmatprep.subr.mxu0 %v1812
    %1939 = vmatpush1.xpose.msra.mxu0 %v721
    %1940 = vmatprep.subr.mxu0 %v1810
    %1941 = vmatpush1.xpose.msra.mxu0 %v703
    %1942 = vmatprep.subr.mxu0 %v1808
    %1943 = vmatpush1.xpose.msra.mxu0 %v685
    %1944 = vmatprep.subr.mxu0 %v1806
    %1945 = vmatpush1.xpose.msra.mxu0 %v667
    %1946 = vmatprep.subr.mxu0 %v1804
    %1947 = vmatpush1.xpose.msra.mxu0 %v649
    %1948 = vmatprep.subr.mxu0 %v1802
    %1949 = vmatpush1.xpose.msra.mxu0 %v631
    %1950 = vmatprep.subr.mxu0 %v1800
    %1951 = vmatpush1.xpose.msra.mxu0 %v613
    %1952 = vmatprep.subr.mxu0 %v1798
    %1953 = vmatpush1.xpose.msra.mxu0 %v595
    %1954 = vmatprep.subr.mxu0 %v1796
    %1955 = vmatpush1.xpose.msra.mxu0 %v577
    %1956 = vmatprep.subr.mxu0 %v1858
    %1957 = vmatpush2.xpose.msra.mxu0 %v1135
    %1958 = vmatprep.subr.mxu0 %v1856
    %1959 = vmatpush2.xpose.msra.mxu0 %v1117
    %1960 = vmatprep.subr.mxu0 %v1854
    %1961 = vmatpush2.xpose.msra.mxu0 %v1099
    %1962 = vmatprep.subr.mxu0 %v1852
    %1963 = vmatpush2.xpose.msra.mxu0 %v1081
    %1964 = vmatprep.subr.mxu0 %v1850
    %1965 = vmatpush2.xpose.msra.mxu0 %v1063
    %1966 = vmatprep.subr.mxu0 %v1848
    %1967 = vmatpush2.xpose.msra.mxu0 %v1045
    %1968 = vmatprep.subr.mxu0 %v1846
    %1969 = vmatpush2.xpose.msra.mxu0 %v1027
    %1970 = vmatprep.subr.mxu0 %v1844
    %1971 = vmatpush2.xpose.msra.mxu0 %v1009
    %1972 = vmatprep.subr.mxu0 %v1842
    %1973 = vmatpush2.xpose.msra.mxu0 %v991
    %1974 = vmatprep.subr.mxu0 %v1840
    %1975 = vmatpush2.xpose.msra.mxu0 %v973
    %1976 = vmatprep.subr.mxu0 %v1838
    %1977 = vmatpush2.xpose.msra.mxu0 %v955
    %1978 = vmatprep.subr.mxu0 %v1836
    %1979 = vmatpush2.xpose.msra.mxu0 %v937
    %1980 = vmatprep.subr.mxu0 %v1834
    %1981 = vmatpush2.xpose.msra.mxu0 %v919
    %1982 = vmatprep.subr.mxu0 %v1832
    %1983 = vmatpush2.xpose.msra.mxu0 %v901
    %1984 = vmatprep.subr.mxu0 %v1830
    %1985 = vmatpush2.xpose.msra.mxu0 %v883
    %1986 = vmatprep.subr.mxu0 %v1828
    %1987 = vmatpush2.xpose.msra.mxu0 %v865
    %1988 = vmatprep.mubr.f32.mxu0 %v1779
    %1989 = vmatmul.mubr.f32.gmra.mxu0 %v293
    %v1990 = vpop.f32.mrf.mxu0
    %v1991 = vadd.f32 0.0, %v1990
    %v1992 = vpop.f32.mrf.mxu0
    %v1993 = vadd.f32 0.0, %v1992
    %1994 = vmatprep.mubr.f32.mxu0 %v1782
    %1995 = vmatmul.mubr.f32.gmra.mxu0 %v295
    %v1996 = vpop.f32.mrf.mxu0
    %v1997 = vadd.f32 0.0, %v1996
    %v1998 = vpop.f32.mrf.mxu0
    %v1999 = vadd.f32 0.0, %v1998
    %2000 = vmatprep.mubr.f32.mxu0 %v1785
    %2001 = vmatmul.mubr.f32.gmra.mxu0 %v297
    %v2002 = vpop.f32.mrf.mxu0
    %v2003 = vadd.f32 0.0, %v2002
    %v2004 = vpop.f32.mrf.mxu0
    %v2005 = vadd.f32 0.0, %v2004
    %2006 = vmatprep.mubr.f32.mxu0 %v1788
    %2007 = vmatmul.mubr.f32.gmra.mxu0 %v299
    %v2008 = vpop.f32.mrf.mxu0
    %v2009 = vadd.f32 0.0, %v2008
    %v2010 = vpop.f32.mrf.mxu0
    %v2011 = vadd.f32 0.0, %v2010
    %2012 = vmatprep.mubr.f32.mxu0 %v1791
    %2013 = vmatmul.mubr.f32.gmra.mxu0 %v301
    %v2014 = vpop.f32.mrf.mxu0
    %v2015 = vadd.f32 0.0, %v2014
    %v2016 = vpop.f32.mrf.mxu0
    %v2017 = vadd.f32 0.0, %v2016
    %2018 = vmatprep.mubr.f32.mxu0 %v1794
    %2019 = vmatmul.mubr.f32.gmra.mxu0 %v303
    %v2020 = vpop.f32.mrf.mxu0
    %v2021 = vadd.f32 0.0, %v2020
    %v2022 = vpop.f32.mrf.mxu0
    %v2023 = vadd.f32 0.0, %v2022
    %2024 = vdwg.mxu0
    %2025 = vmatprep.subr.mxu0 %v1890
    %2026 = vmatpush1.xpose.msra.mxu0 %v1423
    %2027 = vmatprep.subr.mxu0 %v1888
    %2028 = vmatpush1.xpose.msra.mxu0 %v1405
    %2029 = vmatprep.subr.mxu0 %v1886
    %2030 = vmatpush1.xpose.msra.mxu0 %v1387
    %2031 = vmatprep.subr.mxu0 %v1884
    %2032 = vmatpush1.xpose.msra.mxu0 %v1369
    %2033 = vmatprep.subr.mxu0 %v1882
    %2034 = vmatpush1.xpose.msra.mxu0 %v1351
    %2035 = vmatprep.subr.mxu0 %v1880
    %2036 = vmatpush1.xpose.msra.mxu0 %v1333
    %2037 = vmatprep.subr.mxu0 %v1878
    %2038 = vmatpush1.xpose.msra.mxu0 %v1315
    %2039 = vmatprep.subr.mxu0 %v1876
    %2040 = vmatpush1.xpose.msra.mxu0 %v1297
    %2041 = vmatprep.subr.mxu0 %v1874
    %2042 = vmatpush1.xpose.msra.mxu0 %v1279
    %2043 = vmatprep.subr.mxu0 %v1872
    %2044 = vmatpush1.xpose.msra.mxu0 %v1261
    %2045 = vmatprep.subr.mxu0 %v1870
    %2046 = vmatpush1.xpose.msra.mxu0 %v1243
    %2047 = vmatprep.subr.mxu0 %v1868
    %2048 = vmatpush1.xpose.msra.mxu0 %v1225
    %2049 = vmatprep.subr.mxu0 %v1866
    %2050 = vmatpush1.xpose.msra.mxu0 %v1207
    %2051 = vmatprep.subr.mxu0 %v1864
    %2052 = vmatpush1.xpose.msra.mxu0 %v1189
    %2053 = vmatprep.subr.mxu0 %v1862
    %2054 = vmatpush1.xpose.msra.mxu0 %v1171
    %2055 = vmatprep.subr.mxu0 %v1860
    %2056 = vmatpush1.xpose.msra.mxu0 %v1153
    %2057 = vmatprep.subr.mxu0 %v1922
    %2058 = vmatpush2.xpose.msra.mxu0 %v1711
    %2059 = vmatprep.subr.mxu0 %v1920
    %2060 = vmatpush2.xpose.msra.mxu0 %v1693
    %2061 = vmatprep.subr.mxu0 %v1918
    %2062 = vmatpush2.xpose.msra.mxu0 %v1675
    %2063 = vmatprep.subr.mxu0 %v1916
    %2064 = vmatpush2.xpose.msra.mxu0 %v1657
    %2065 = vmatprep.subr.mxu0 %v1914
    %2066 = vmatpush2.xpose.msra.mxu0 %v1639
    %2067 = vmatprep.subr.mxu0 %v1912
    %2068 = vmatpush2.xpose.msra.mxu0 %v1621
    %2069 = vmatprep.subr.mxu0 %v1910
    %2070 = vmatpush2.xpose.msra.mxu0 %v1603
    %2071 = vmatprep.subr.mxu0 %v1908
    %2072 = vmatpush2.xpose.msra.mxu0 %v1585
    %2073 = vmatprep.subr.mxu0 %v1906
    %2074 = vmatpush2.xpose.msra.mxu0 %v1567
    %2075 = vmatprep.subr.mxu0 %v1904
    %2076 = vmatpush2.xpose.msra.mxu0 %v1549
    %2077 = vmatprep.subr.mxu0 %v1902
    %2078 = vmatpush2.xpose.msra.mxu0 %v1531
    %2079 = vmatprep.subr.mxu0 %v1900
    %2080 = vmatpush2.xpose.msra.mxu0 %v1513
    %2081 = vmatprep.subr.mxu0 %v1898
    %2082 = vmatpush2.xpose.msra.mxu0 %v1495
    %2083 = vmatprep.subr.mxu0 %v1896
    %2084 = vmatpush2.xpose.msra.mxu0 %v1477
    %2085 = vmatprep.subr.mxu0 %v1894
    %2086 = vmatpush2.xpose.msra.mxu0 %v1459
    %2087 = vmatprep.subr.mxu0 %v1892
    %2088 = vmatpush2.xpose.msra.mxu0 %v1441
    %2089 = vmatprep.mubr.f32.mxu0 %v1779
    %2090 = vmatmul.mubr.f32.gmra.mxu0 %v293
    %v2091 = vpop.f32.mrf.mxu0
    %v2092 = vadd.f32 0.0, %v2091
    %v2093 = vpop.f32.mrf.mxu0
    %v2094 = vadd.f32 0.0, %v2093
    %2095 = vmatprep.mubr.f32.mxu0 %v1782
    %2096 = vmatmul.mubr.f32.gmra.mxu0 %v295
    %v2097 = vpop.f32.mrf.mxu0
    %v2098 = vadd.f32 0.0, %v2097
    %v2099 = vpop.f32.mrf.mxu0
    %v2100 = vadd.f32 0.0, %v2099
    %2101 = vmatprep.mubr.f32.mxu0 %v1785
    %2102 = vmatmul.mubr.f32.gmra.mxu0 %v297
    %v2103 = vpop.f32.mrf.mxu0
    %v2104 = vadd.f32 0.0, %v2103
    %v2105 = vpop.f32.mrf.mxu0
    %v2106 = vadd.f32 0.0, %v2105
    %2107 = vmatprep.mubr.f32.mxu0 %v1788
    %2108 = vmatmul.mubr.f32.gmra.mxu0 %v299
    %v2109 = vpop.f32.mrf.mxu0
    %v2110 = vadd.f32 0.0, %v2109
    %v2111 = vpop.f32.mrf.mxu0
    %v2112 = vadd.f32 0.0, %v2111
    %2113 = vmatprep.mubr.f32.mxu0 %v1791
    %2114 = vmatmul.mubr.f32.gmra.mxu0 %v301
    %v2115 = vpop.f32.mrf.mxu0
    %v2116 = vadd.f32 0.0, %v2115
    %v2117 = vpop.f32.mrf.mxu0
    %v2118 = vadd.f32 0.0, %v2117
    %2119 = vmatprep.mubr.f32.mxu0 %v1794
    %2120 = vmatmul.mubr.f32.gmra.mxu0 %v303
    %v2121 = vpop.f32.mrf.mxu0
    %v2122 = vadd.f32 0.0, %v2121
    %v2123 = vpop.f32.mrf.mxu0
    %v2124 = vadd.f32 0.0, %v2123
    %2125 = vdwg.mxu0
    %s2126 = sld [smem:[#allocation2]]
    %s2127 = sld [smem:[#allocation2 + $0x1]]
    %s2128 = sld [smem:[#allocation2 + $0x2]]
    %v2129 = vstv %s2126
    %v2130 = vadd.f32 %v2021, %v2129
    %v2131 = vadd.f32 %v2023, %v2129
    %v2132 = vadd.f32 %v2122, %v2129
    %v2133 = vadd.f32 %v2124, %v2129
    %v2134 = vstv %s2127
    %v2135 = vadd.f32 %v1991, %v2134
    %v2136 = vadd.f32 %v1993, %v2134
    %v2137 = vadd.f32 %v2092, %v2134
    %v2138 = vadd.f32 %v2094, %v2134
    %v2139 = vadd.f32 %v1997, %v2134
    %v2140 = vadd.f32 %v1999, %v2134
    %v2141 = vadd.f32 %v2098, %v2134
    %v2142 = vadd.f32 %v2100, %v2134
    %v2143 = vadd.f32 %v2003, %v2134
    %v2144 = vadd.f32 %v2005, %v2134
    %v2145 = vadd.f32 %v2104, %v2134
    %v2146 = vadd.f32 %v2106, %v2134
    %v2147 = vadd.f32 %v2009, %v2134
    %v2148 = vadd.f32 %v2011, %v2134
    %v2149 = vadd.f32 %v2110, %v2134
    %v2150 = vadd.f32 %v2112, %v2134
    %v2151 = vadd.f32 %v2015, %v2134
    %v2152 = vadd.f32 %v2017, %v2134
    %v2153 = vadd.f32 %v2116, %v2134
    %v2154 = vadd.f32 %v2118, %v2134
    %v2155 = vmax.f32 %v2135, 0.0
    %v2156 = vmax.f32 %v2136, 0.0
    %v2157 = vmax.f32 %v2137, 0.0
    %v2158 = vmax.f32 %v2138, 0.0
    %v2159 = vmax.f32 %v2139, 0.0
    %v2160 = vmax.f32 %v2140, 0.0
    %v2161 = vmax.f32 %v2141, 0.0
    %v2162 = vmax.f32 %v2142, 0.0
    %v2163 = vmax.f32 %v2143, 0.0
    %v2164 = vmax.f32 %v2144, 0.0
    %v2165 = vmax.f32 %v2145, 0.0
    %v2166 = vmax.f32 %v2146, 0.0
    %v2167 = vmax.f32 %v2147, 0.0
    %v2168 = vmax.f32 %v2148, 0.0
    %v2169 = vmax.f32 %v2149, 0.0
    %v2170 = vmax.f32 %v2150, 0.0
    %v2171 = vmax.f32 %v2151, 0.0
    %v2172 = vmax.f32 %v2152, 0.0
    %v2173 = vmax.f32 %v2153, 0.0
    %v2174 = vmax.f32 %v2154, 0.0
    %v2175 = vld [vmem:[%s2] sm:$0xff]
    %v2176 = vld [vmem:[%s2 + $0x8] sm:$0xff]
    %v2177 = vld [vmem:[%s2 + $0x10] sm:$0xff]
    %v2178 = vld [vmem:[%s2 + $0x18] sm:$0xff]
    %v2179 = vld [vmem:[%s2 + $0x20] sm:$0xff]
    %v2180 = vld [vmem:[%s2 + $0x28] sm:$0xff]
    %v2181 = vld [vmem:[%s2 + $0x30] sm:$0xff]
    %v2182 = vld [vmem:[%s2 + $0x38] sm:$0xff]
    %v2183 = vld [vmem:[%s2 + $0x40] sm:$0xff]
    %v2184 = vld [vmem:[%s2 + $0x48] sm:$0xff]
    %v2185 = vld [vmem:[%s2 + $0x50] sm:$0xff]
    %v2186 = vld [vmem:[%s2 + $0x58] sm:$0xff]
    %v2187 = vld [vmem:[%s2 + $0x60] sm:$0xff]
    %v2188 = vld [vmem:[%s2 + $0x68] sm:$0xff]
    %v2189 = vld [vmem:[%s2 + $0x70] sm:$0xff]
    %v2190 = vld [vmem:[%s2 + $0x78] sm:$0xff]
    %2192 = vset.pattern.permute.xlu0 0
    %2193 = vperm.xlu0 %2192, %v2175
    %v2194 = vpop.permute.xlu0 %2193
    %2197 = vset.pattern.permute.xlu0 0
    %2198 = vperm.xlu0 %2197, %v2176
    %v2199 = vpop.permute.xlu0 %2198
    %2202 = vset.pattern.permute.xlu0 0
    %2203 = vperm.xlu0 %2202, %v2177
    %v2204 = vpop.permute.xlu0 %2203
    %2207 = vset.pattern.permute.xlu0 0
    %2208 = vperm.xlu0 %2207, %v2178
    %v2209 = vpop.permute.xlu0 %2208
    %2212 = vset.pattern.permute.xlu0 0
    %2213 = vperm.xlu0 %2212, %v2179
    %v2214 = vpop.permute.xlu0 %2213
    %2217 = vset.pattern.permute.xlu0 0
    %2218 = vperm.xlu0 %2217, %v2180
    %v2219 = vpop.permute.xlu0 %2218
    %2222 = vset.pattern.permute.xlu0 0
    %2223 = vperm.xlu0 %2222, %v2181
    %v2224 = vpop.permute.xlu0 %2223
    %2227 = vset.pattern.permute.xlu0 0
    %2228 = vperm.xlu0 %2227, %v2182
    %v2229 = vpop.permute.xlu0 %2228
    %2232 = vset.pattern.permute.xlu0 0
    %2233 = vperm.xlu0 %2232, %v2183
    %v2234 = vpop.permute.xlu0 %2233
    %2237 = vset.pattern.permute.xlu0 0
    %2238 = vperm.xlu0 %2237, %v2184
    %v2239 = vpop.permute.xlu0 %2238
    %2242 = vset.pattern.permute.xlu0 0
    %2243 = vperm.xlu0 %2242, %v2185
    %v2244 = vpop.permute.xlu0 %2243
    %2247 = vset.pattern.permute.xlu0 0
    %2248 = vperm.xlu0 %2247, %v2186
    %v2249 = vpop.permute.xlu0 %2248
    %2252 = vset.pattern.permute.xlu0 0
    %2253 = vperm.xlu0 %2252, %v2187
    %v2254 = vpop.permute.xlu0 %2253
    %2257 = vset.pattern.permute.xlu0 0
    %2258 = vperm.xlu0 %2257, %v2188
    %v2259 = vpop.permute.xlu0 %2258
    %2262 = vset.pattern.permute.xlu0 0
    %2263 = vperm.xlu0 %2262, %v2189
    %v2264 = vpop.permute.xlu0 %2263
    %2267 = vset.pattern.permute.xlu0 0
    %2268 = vperm.xlu0 %2267, %v2190
    %v2269 = vpop.permute.xlu0 %2268
    %v2271 = vlaneseq
    %v2272 = vshrl.u32 %v2271, 7
    %v2273 = vsub.s32 0, %v2272
    %v2274 = vrot.slane %v2130, %v2273
    %v2275 = vlaneseq
    %v2276 = vshrl.u32 %v2275, 7
    %v2277 = vsub.s32 0, %v2276
    %v2278 = vrot.slane %v2131, %v2277
    %v2279 = vlaneseq
    %v2280 = vshrl.u32 %v2279, 7
    %v2281 = vsub.s32 0, %v2280
    %v2282 = vrot.slane %v2132, %v2281
    %v2283 = vlaneseq
    %v2284 = vshrl.u32 %v2283, 7
    %v2285 = vsub.s32 0, %v2284
    %v2286 = vrot.slane %v2133, %v2285
    %v2287 = vmul.f32 %v2194, %v2274
    %v2288 = vmul.f32 %v2194, %v2278
    %v2289 = vmul.f32 %v2194, %v2282
    %v2290 = vmul.f32 %v2194, %v2286
    %v2291 = vmul.f32 %v2199, %v2274
    %v2292 = vmul.f32 %v2199, %v2278
    %v2293 = vmul.f32 %v2199, %v2282
    %v2294 = vmul.f32 %v2199, %v2286
    %v2295 = vmul.f32 %v2204, %v2274
    %v2296 = vmul.f32 %v2204, %v2278
    %v2297 = vmul.f32 %v2204, %v2282
    %v2298 = vmul.f32 %v2204, %v2286
    %v2299 = vmul.f32 %v2209, %v2274
    %v2300 = vmul.f32 %v2209, %v2278
    %v2301 = vmul.f32 %v2209, %v2282
    %v2302 = vmul.f32 %v2209, %v2286
    %v2303 = vmul.f32 %v2214, %v2274
    %v2304 = vmul.f32 %v2214, %v2278
    %v2305 = vmul.f32 %v2214, %v2282
    %v2306 = vmul.f32 %v2214, %v2286
    %v2307 = vmul.f32 %v2219, %v2274
    %v2308 = vmul.f32 %v2219, %v2278
    %v2309 = vmul.f32 %v2219, %v2282
    %v2310 = vmul.f32 %v2219, %v2286
    %v2311 = vmul.f32 %v2224, %v2274
    %v2312 = vmul.f32 %v2224, %v2278
    %v2313 = vmul.f32 %v2224, %v2282
    %v2314 = vmul.f32 %v2224, %v2286
    %v2315 = vmul.f32 %v2229, %v2274
    %v2316 = vmul.f32 %v2229, %v2278
    %v2317 = vmul.f32 %v2229, %v2282
    %v2318 = vmul.f32 %v2229, %v2286
    %v2319 = vmul.f32 %v2234, %v2274
    %v2320 = vmul.f32 %v2234, %v2278
    %v2321 = vmul.f32 %v2234, %v2282
    %v2322 = vmul.f32 %v2234, %v2286
    %v2323 = vmul.f32 %v2239, %v2274
    %v2324 = vmul.f32 %v2239, %v2278
    %v2325 = vmul.f32 %v2239, %v2282
    %v2326 = vmul.f32 %v2239, %v2286
    %v2327 = vmul.f32 %v2244, %v2274
    %v2328 = vmul.f32 %v2244, %v2278
    %v2329 = vmul.f32 %v2244, %v2282
    %v2330 = vmul.f32 %v2244, %v2286
    %v2331 = vmul.f32 %v2249, %v2274
    %v2332 = vmul.f32 %v2249, %v2278
    %v2333 = vmul.f32 %v2249, %v2282
    %v2334 = vmul.f32 %v2249, %v2286
    %v2335 = vmul.f32 %v2254, %v2274
    %v2336 = vmul.f32 %v2254, %v2278
    %v2337 = vmul.f32 %v2254, %v2282
    %v2338 = vmul.f32 %v2254, %v2286
    %v2339 = vmul.f32 %v2259, %v2274
    %v2340 = vmul.f32 %v2259, %v2278
    %v2341 = vmul.f32 %v2259, %v2282
    %v2342 = vmul.f32 %v2259, %v2286
    %v2343 = vmul.f32 %v2264, %v2274
    %v2344 = vmul.f32 %v2264, %v2278
    %v2345 = vmul.f32 %v2264, %v2282
    %v2346 = vmul.f32 %v2264, %v2286
    %v2347 = vmul.f32 %v2269, %v2274
    %v2348 = vmul.f32 %v2269, %v2278
    %v2349 = vmul.f32 %v2269, %v2282
    %v2350 = vmul.f32 %v2269, %v2286
    %2351 = vset.pattern.permute.xlu0 1
    %2352 = vperm.xlu0 %2351, %v2175
    %v2353 = vpop.permute.xlu0 %2352
    %2355 = vset.pattern.permute.xlu0 1
    %2356 = vperm.xlu0 %2355, %v2176
    %v2357 = vpop.permute.xlu0 %2356
    %2359 = vset.pattern.permute.xlu0 1
    %2360 = vperm.xlu0 %2359, %v2177
    %v2361 = vpop.permute.xlu0 %2360
    %2363 = vset.pattern.permute.xlu0 1
    %2364 = vperm.xlu0 %2363, %v2178
    %v2365 = vpop.permute.xlu0 %2364
    %2367 = vset.pattern.permute.xlu0 1
    %2368 = vperm.xlu0 %2367, %v2179
    %v2369 = vpop.permute.xlu0 %2368
    %2371 = vset.pattern.permute.xlu0 1
    %2372 = vperm.xlu0 %2371, %v2180
    %v2373 = vpop.permute.xlu0 %2372
    %2375 = vset.pattern.permute.xlu0 1
    %2376 = vperm.xlu0 %2375, %v2181
    %v2377 = vpop.permute.xlu0 %2376
    %2379 = vset.pattern.permute.xlu0 1
    %2380 = vperm.xlu0 %2379, %v2182
    %v2381 = vpop.permute.xlu0 %2380
    %2383 = vset.pattern.permute.xlu0 1
    %2384 = vperm.xlu0 %2383, %v2183
    %v2385 = vpop.permute.xlu0 %2384
    %2387 = vset.pattern.permute.xlu0 1
    %2388 = vperm.xlu0 %2387, %v2184
    %v2389 = vpop.permute.xlu0 %2388
    %2391 = vset.pattern.permute.xlu0 1
    %2392 = vperm.xlu0 %2391, %v2185
    %v2393 = vpop.permute.xlu0 %2392
    %2395 = vset.pattern.permute.xlu0 1
    %2396 = vperm.xlu0 %2395, %v2186
    %v2397 = vpop.permute.xlu0 %2396
    %2399 = vset.pattern.permute.xlu0 1
    %2400 = vperm.xlu0 %2399, %v2187
    %v2401 = vpop.permute.xlu0 %2400
    %2403 = vset.pattern.permute.xlu0 1
    %2404 = vperm.xlu0 %2403, %v2188
    %v2405 = vpop.permute.xlu0 %2404
    %2407 = vset.pattern.permute.xlu0 1
    %2408 = vperm.xlu0 %2407, %v2189
    %v2409 = vpop.permute.xlu0 %2408
    %2411 = vset.pattern.permute.xlu0 1
    %2412 = vperm.xlu0 %2411, %v2190
    %v2413 = vpop.permute.xlu0 %2412
    %v2415 = vadd.f32 %v2287, %v2353
    %v2416 = vadd.f32 %v2288, %v2353
    %v2417 = vadd.f32 %v2289, %v2353
    %v2418 = vadd.f32 %v2290, %v2353
    %v2419 = vadd.f32 %v2291, %v2357
    %v2420 = vadd.f32 %v2292, %v2357
    %v2421 = vadd.f32 %v2293, %v2357
    %v2422 = vadd.f32 %v2294, %v2357
    %v2423 = vadd.f32 %v2295, %v2361
    %v2424 = vadd.f32 %v2296, %v2361
    %v2425 = vadd.f32 %v2297, %v2361
    %v2426 = vadd.f32 %v2298, %v2361
    %v2427 = vadd.f32 %v2299, %v2365
    %v2428 = vadd.f32 %v2300, %v2365
    %v2429 = vadd.f32 %v2301, %v2365
    %v2430 = vadd.f32 %v2302, %v2365
    %v2431 = vadd.f32 %v2303, %v2369
    %v2432 = vadd.f32 %v2304, %v2369
    %v2433 = vadd.f32 %v2305, %v2369
    %v2434 = vadd.f32 %v2306, %v2369
    %v2435 = vadd.f32 %v2307, %v2373
    %v2436 = vadd.f32 %v2308, %v2373
    %v2437 = vadd.f32 %v2309, %v2373
    %v2438 = vadd.f32 %v2310, %v2373
    %v2439 = vadd.f32 %v2311, %v2377
    %v2440 = vadd.f32 %v2312, %v2377
    %v2441 = vadd.f32 %v2313, %v2377
    %v2442 = vadd.f32 %v2314, %v2377
    %v2443 = vadd.f32 %v2315, %v2381
    %v2444 = vadd.f32 %v2316, %v2381
    %v2445 = vadd.f32 %v2317, %v2381
    %v2446 = vadd.f32 %v2318, %v2381
    %v2447 = vadd.f32 %v2319, %v2385
    %v2448 = vadd.f32 %v2320, %v2385
    %v2449 = vadd.f32 %v2321, %v2385
    %v2450 = vadd.f32 %v2322, %v2385
    %v2451 = vadd.f32 %v2323, %v2389
    %v2452 = vadd.f32 %v2324, %v2389
    %v2453 = vadd.f32 %v2325, %v2389
    %v2454 = vadd.f32 %v2326, %v2389
    %v2455 = vadd.f32 %v2327, %v2393
    %v2456 = vadd.f32 %v2328, %v2393
    %v2457 = vadd.f32 %v2329, %v2393
    %v2458 = vadd.f32 %v2330, %v2393
    %v2459 = vadd.f32 %v2331, %v2397
    %v2460 = vadd.f32 %v2332, %v2397
    %v2461 = vadd.f32 %v2333, %v2397
    %v2462 = vadd.f32 %v2334, %v2397
    %v2463 = vadd.f32 %v2335, %v2401
    %v2464 = vadd.f32 %v2336, %v2401
    %v2465 = vadd.f32 %v2337, %v2401
    %v2466 = vadd.f32 %v2338, %v2401
    %v2467 = vadd.f32 %v2339, %v2405
    %v2468 = vadd.f32 %v2340, %v2405
    %v2469 = vadd.f32 %v2341, %v2405
    %v2470 = vadd.f32 %v2342, %v2405
    %v2471 = vadd.f32 %v2343, %v2409
    %v2472 = vadd.f32 %v2344, %v2409
    %v2473 = vadd.f32 %v2345, %v2409
    %v2474 = vadd.f32 %v2346, %v2409
    %v2475 = vadd.f32 %v2347, %v2413
    %v2476 = vadd.f32 %v2348, %v2413
    %v2477 = vadd.f32 %v2349, %v2413
    %v2478 = vadd.f32 %v2350, %v2413
    %v2479 = vmax.f32 %v2415, 0.0
    %v2480 = vmax.f32 %v2416, 0.0
    %v2481 = vmax.f32 %v2417, 0.0
    %v2482 = vmax.f32 %v2418, 0.0
    %v2483 = vmax.f32 %v2419, 0.0
    %v2484 = vmax.f32 %v2420, 0.0
    %v2485 = vmax.f32 %v2421, 0.0
    %v2486 = vmax.f32 %v2422, 0.0
    %v2487 = vmax.f32 %v2423, 0.0
    %v2488 = vmax.f32 %v2424, 0.0
    %v2489 = vmax.f32 %v2425, 0.0
    %v2490 = vmax.f32 %v2426, 0.0
    %v2491 = vmax.f32 %v2427, 0.0
    %v2492 = vmax.f32 %v2428, 0.0
    %v2493 = vmax.f32 %v2429, 0.0
    %v2494 = vmax.f32 %v2430, 0.0
    %v2495 = vmax.f32 %v2431, 0.0
    %v2496 = vmax.f32 %v2432, 0.0
    %v2497 = vmax.f32 %v2433, 0.0
    %v2498 = vmax.f32 %v2434, 0.0
    %v2499 = vmax.f32 %v2435, 0.0
    %v2500 = vmax.f32 %v2436, 0.0
    %v2501 = vmax.f32 %v2437, 0.0
    %v2502 = vmax.f32 %v2438, 0.0
    %v2503 = vmax.f32 %v2439, 0.0
    %v2504 = vmax.f32 %v2440, 0.0
    %v2505 = vmax.f32 %v2441, 0.0
    %v2506 = vmax.f32 %v2442, 0.0
    %v2507 = vmax.f32 %v2443, 0.0
    %v2508 = vmax.f32 %v2444, 0.0
    %v2509 = vmax.f32 %v2445, 0.0
    %v2510 = vmax.f32 %v2446, 0.0
    %v2511 = vmax.f32 %v2447, 0.0
    %v2512 = vmax.f32 %v2448, 0.0
    %v2513 = vmax.f32 %v2449, 0.0
    %v2514 = vmax.f32 %v2450, 0.0
    %v2515 = vmax.f32 %v2451, 0.0
    %v2516 = vmax.f32 %v2452, 0.0
    %v2517 = vmax.f32 %v2453, 0.0
    %v2518 = vmax.f32 %v2454, 0.0
    %v2519 = vmax.f32 %v2455, 0.0
    %v2520 = vmax.f32 %v2456, 0.0
    %v2521 = vmax.f32 %v2457, 0.0
    %v2522 = vmax.f32 %v2458, 0.0
    %v2523 = vmax.f32 %v2459, 0.0
    %v2524 = vmax.f32 %v2460, 0.0
    %v2525 = vmax.f32 %v2461, 0.0
    %v2526 = vmax.f32 %v2462, 0.0
    %v2527 = vmax.f32 %v2463, 0.0
    %v2528 = vmax.f32 %v2464, 0.0
    %v2529 = vmax.f32 %v2465, 0.0
    %v2530 = vmax.f32 %v2466, 0.0
    %v2531 = vmax.f32 %v2467, 0.0
    %v2532 = vmax.f32 %v2468, 0.0
    %v2533 = vmax.f32 %v2469, 0.0
    %v2534 = vmax.f32 %v2470, 0.0
    %v2535 = vmax.f32 %v2471, 0.0
    %v2536 = vmax.f32 %v2472, 0.0
    %v2537 = vmax.f32 %v2473, 0.0
    %v2538 = vmax.f32 %v2474, 0.0
    %v2539 = vmax.f32 %v2475, 0.0
    %v2540 = vmax.f32 %v2476, 0.0
    %v2541 = vmax.f32 %v2477, 0.0
    %v2542 = vmax.f32 %v2478, 0.0
    %v2543 = vld [vmem:[%s4] sm:$0x1]
    %2544 = vmatprep.subr.mxu0 %v2540
    %2545 = vmatpush1.msra.mxu0 %v2539
    %2546 = vmatprep.subr.mxu0 %v2536
    %2547 = vmatpush1.msra.mxu0 %v2535
    %2548 = vmatprep.subr.mxu0 %v2532
    %2549 = vmatpush1.msra.mxu0 %v2531
    %2550 = vmatprep.subr.mxu0 %v2528
    %2551 = vmatpush1.msra.mxu0 %v2527
    %2552 = vmatprep.subr.mxu0 %v2524
    %2553 = vmatpush1.msra.mxu0 %v2523
    %2554 = vmatprep.subr.mxu0 %v2520
    %2555 = vmatpush1.msra.mxu0 %v2519
    %2556 = vmatprep.subr.mxu0 %v2516
    %2557 = vmatpush1.msra.mxu0 %v2515
    %2558 = vmatprep.subr.mxu0 %v2512
    %2559 = vmatpush1.msra.mxu0 %v2511
    %2560 = vmatprep.subr.mxu0 %v2508
    %2561 = vmatpush1.msra.mxu0 %v2507
    %2562 = vmatprep.subr.mxu0 %v2504
    %2563 = vmatpush1.msra.mxu0 %v2503
    %2564 = vmatprep.subr.mxu0 %v2500
    %2565 = vmatpush1.msra.mxu0 %v2499
    %2566 = vmatprep.subr.mxu0 %v2496
    %2567 = vmatpush1.msra.mxu0 %v2495
    %2568 = vmatprep.subr.mxu0 %v2492
    %2569 = vmatpush1.msra.mxu0 %v2491
    %2570 = vmatprep.subr.mxu0 %v2488
    %2571 = vmatpush1.msra.mxu0 %v2487
    %2572 = vmatprep.subr.mxu0 %v2484
    %2573 = vmatpush1.msra.mxu0 %v2483
    %2574 = vmatprep.subr.mxu0 %v2480
    %2575 = vmatpush1.msra.mxu0 %v2479
    %2576 = vmatprep.subr.mxu0 0.0
    %2577 = vmatpush2.msra.mxu0 0.0
    %2578 = vmatprep.subr.mxu0 0.0
    %2579 = vmatpush2.msra.mxu0 0.0
    %2580 = vmatprep.subr.mxu0 0.0
    %2581 = vmatpush2.msra.mxu0 0.0
    %2582 = vmatprep.subr.mxu0 0.0
    %2583 = vmatpush2.msra.mxu0 0.0
    %2584 = vmatprep.subr.mxu0 0.0
    %2585 = vmatpush2.msra.mxu0 0.0
    %2586 = vmatprep.subr.mxu0 0.0
    %2587 = vmatpush2.msra.mxu0 0.0
    %2588 = vmatprep.subr.mxu0 0.0
    %2589 = vmatpush2.msra.mxu0 0.0
    %2590 = vmatprep.subr.mxu0 0.0
    %2591 = vmatpush2.msra.mxu0 0.0
    %2592 = vmatprep.subr.mxu0 0.0
    %2593 = vmatpush2.msra.mxu0 0.0
    %2594 = vmatprep.subr.mxu0 0.0
    %2595 = vmatpush2.msra.mxu0 0.0
    %2596 = vmatprep.subr.mxu0 0.0
    %2597 = vmatpush2.msra.mxu0 0.0
    %2598 = vmatprep.subr.mxu0 0.0
    %2599 = vmatpush2.msra.mxu0 0.0
    %2600 = vmatprep.subr.mxu0 0.0
    %2601 = vmatpush2.msra.mxu0 0.0
    %2602 = vmatprep.subr.mxu0 0.0
    %2603 = vmatpush2.msra.mxu0 0.0
    %2604 = vmatprep.subr.mxu0 0.0
    %2605 = vmatpush2.msra.mxu0 0.0
    %2606 = vmatprep.subr.mxu0 0.0
    %2607 = vmatpush2.msra.mxu0 0.0
    %2608 = vmatprep.mubr.f32.mxu0 0.0
    %2609 = vmatmul.mubr.f32.gmra.mxu0 %v2543
    %v2610 = vpop.f32.mrf.mxu0
    %v2611 = vadd.f32 0.0, %v2610
    %v2612 = vpop.f32.mrf.mxu0
    %v2613 = vadd.f32 0.0, %v2612
    %2614 = vdwg.mxu0
    %2615 = vmatprep.subr.mxu0 %v2542
    %2616 = vmatpush1.msra.mxu0 %v2541
    %2617 = vmatprep.subr.mxu0 %v2538
    %2618 = vmatpush1.msra.mxu0 %v2537
    %2619 = vmatprep.subr.mxu0 %v2534
    %2620 = vmatpush1.msra.mxu0 %v2533
    %2621 = vmatprep.subr.mxu0 %v2530
    %2622 = vmatpush1.msra.mxu0 %v2529
    %2623 = vmatprep.subr.mxu0 %v2526
    %2624 = vmatpush1.msra.mxu0 %v2525
    %2625 = vmatprep.subr.mxu0 %v2522
    %2626 = vmatpush1.msra.mxu0 %v2521
    %2627 = vmatprep.subr.mxu0 %v2518
    %2628 = vmatpush1.msra.mxu0 %v2517
    %2629 = vmatprep.subr.mxu0 %v2514
    %2630 = vmatpush1.msra.mxu0 %v2513
    %2631 = vmatprep.subr.mxu0 %v2510
    %2632 = vmatpush1.msra.mxu0 %v2509
    %2633 = vmatprep.subr.mxu0 %v2506
    %2634 = vmatpush1.msra.mxu0 %v2505
    %2635 = vmatprep.subr.mxu0 %v2502
    %2636 = vmatpush1.msra.mxu0 %v2501
    %2637 = vmatprep.subr.mxu0 %v2498
    %2638 = vmatpush1.msra.mxu0 %v2497
    %2639 = vmatprep.subr.mxu0 %v2494
    %2640 = vmatpush1.msra.mxu0 %v2493
    %2641 = vmatprep.subr.mxu0 %v2490
    %2642 = vmatpush1.msra.mxu0 %v2489
    %2643 = vmatprep.subr.mxu0 %v2486
    %2644 = vmatpush1.msra.mxu0 %v2485
    %2645 = vmatprep.subr.mxu0 %v2482
    %2646 = vmatpush1.msra.mxu0 %v2481
    %2647 = vmatprep.subr.mxu0 0.0
    %2648 = vmatpush2.msra.mxu0 0.0
    %2649 = vmatprep.subr.mxu0 0.0
    %2650 = vmatpush2.msra.mxu0 0.0
    %2651 = vmatprep.subr.mxu0 0.0
    %2652 = vmatpush2.msra.mxu0 0.0
    %2653 = vmatprep.subr.mxu0 0.0
    %2654 = vmatpush2.msra.mxu0 0.0
    %2655 = vmatprep.subr.mxu0 0.0
    %2656 = vmatpush2.msra.mxu0 0.0
    %2657 = vmatprep.subr.mxu0 0.0
    %2658 = vmatpush2.msra.mxu0 0.0
    %2659 = vmatprep.subr.mxu0 0.0
    %2660 = vmatpush2.msra.mxu0 0.0
    %2661 = vmatprep.subr.mxu0 0.0
    %2662 = vmatpush2.msra.mxu0 0.0
    %2663 = vmatprep.subr.mxu0 0.0
    %2664 = vmatpush2.msra.mxu0 0.0
    %2665 = vmatprep.subr.mxu0 0.0
    %2666 = vmatpush2.msra.mxu0 0.0
    %2667 = vmatprep.subr.mxu0 0.0
    %2668 = vmatpush2.msra.mxu0 0.0
    %2669 = vmatprep.subr.mxu0 0.0
    %2670 = vmatpush2.msra.mxu0 0.0
    %2671 = vmatprep.subr.mxu0 0.0
    %2672 = vmatpush2.msra.mxu0 0.0
    %2673 = vmatprep.subr.mxu0 0.0
    %2674 = vmatpush2.msra.mxu0 0.0
    %2675 = vmatprep.subr.mxu0 0.0
    %2676 = vmatpush2.msra.mxu0 0.0
    %2677 = vmatprep.subr.mxu0 0.0
    %2678 = vmatpush2.msra.mxu0 0.0
    %2679 = vmatprep.mubr.f32.mxu0 0.0
    %2680 = vmatmul.mubr.f32.gmra.mxu0 %v2543
    %v2681 = vpop.f32.mrf.mxu0
    %v2682 = vadd.f32 0.0, %v2681
    %v2683 = vpop.f32.mrf.mxu0
    %v2684 = vadd.f32 0.0, %v2683
    %2685 = vdwg.mxu0
    %v2686 = vld [vmem:[%s3] sm:$0xff]
    %v2687 = vld [vmem:[%s3 + $0x8] sm:$0xff]
    %v2688 = vld [vmem:[%s3 + $0x10] sm:$0xff]
    %v2689 = vld [vmem:[%s3 + $0x18] sm:$0xff]
    %v2690 = vld [vmem:[%s3 + $0x20] sm:$0xff]
    %v2691 = vld [vmem:[%s3 + $0x28] sm:$0xff]
    %v2692 = vld [vmem:[%s3 + $0x30] sm:$0xff]
    %v2693 = vld [vmem:[%s3 + $0x38] sm:$0xff]
    %v2694 = vld [vmem:[%s3 + $0x40] sm:$0xff]
    %v2695 = vld [vmem:[%s3 + $0x48] sm:$0xff]
    %v2696 = vld [vmem:[%s3 + $0x50] sm:$0xff]
    %v2697 = vld [vmem:[%s3 + $0x58] sm:$0xff]
    %v2698 = vld [vmem:[%s3 + $0x60] sm:$0xff]
    %v2699 = vld [vmem:[%s3 + $0x68] sm:$0xff]
    %v2700 = vld [vmem:[%s3 + $0x70] sm:$0xff]
    %v2701 = vld [vmem:[%s3 + $0x78] sm:$0xff]
    %2702 = vset.pattern.permute.xlu0 2
    %2703 = vperm.xlu0 %2702, %v2175
    %v2704 = vpop.permute.xlu0 %2703
    %2706 = vset.pattern.permute.xlu0 2
    %2707 = vperm.xlu0 %2706, %v2176
    %v2708 = vpop.permute.xlu0 %2707
    %2710 = vset.pattern.permute.xlu0 2
    %2711 = vperm.xlu0 %2710, %v2177
    %v2712 = vpop.permute.xlu0 %2711
    %2714 = vset.pattern.permute.xlu0 2
    %2715 = vperm.xlu0 %2714, %v2178
    %v2716 = vpop.permute.xlu0 %2715
    %2718 = vset.pattern.permute.xlu0 2
    %2719 = vperm.xlu0 %2718, %v2179
    %v2720 = vpop.permute.xlu0 %2719
    %2722 = vset.pattern.permute.xlu0 2
    %2723 = vperm.xlu0 %2722, %v2180
    %v2724 = vpop.permute.xlu0 %2723
    %2726 = vset.pattern.permute.xlu0 2
    %2727 = vperm.xlu0 %2726, %v2181
    %v2728 = vpop.permute.xlu0 %2727
    %2730 = vset.pattern.permute.xlu0 2
    %2731 = vperm.xlu0 %2730, %v2182
    %v2732 = vpop.permute.xlu0 %2731
    %2734 = vset.pattern.permute.xlu0 2
    %2735 = vperm.xlu0 %2734, %v2183
    %v2736 = vpop.permute.xlu0 %2735
    %2738 = vset.pattern.permute.xlu0 2
    %2739 = vperm.xlu0 %2738, %v2184
    %v2740 = vpop.permute.xlu0 %2739
    %2742 = vset.pattern.permute.xlu0 2
    %2743 = vperm.xlu0 %2742, %v2185
    %v2744 = vpop.permute.xlu0 %2743
    %2746 = vset.pattern.permute.xlu0 2
    %2747 = vperm.xlu0 %2746, %v2186
    %v2748 = vpop.permute.xlu0 %2747
    %2750 = vset.pattern.permute.xlu0 2
    %2751 = vperm.xlu0 %2750, %v2187
    %v2752 = vpop.permute.xlu0 %2751
    %2754 = vset.pattern.permute.xlu0 2
    %2755 = vperm.xlu0 %2754, %v2188
    %v2756 = vpop.permute.xlu0 %2755
    %2758 = vset.pattern.permute.xlu0 2
    %2759 = vperm.xlu0 %2758, %v2189
    %v2760 = vpop.permute.xlu0 %2759
    %2762 = vset.pattern.permute.xlu0 2
    %2763 = vperm.xlu0 %2762, %v2190
    %v2764 = vpop.permute.xlu0 %2763
    %vm2766 = vcmask 326656
    %v2768 = vsel %vm2766, %v2686, 0
    %v2771 = vsel %vm2766, %v2687, 0
    %v2774 = vsel %vm2766, %v2688, 0
    %v2777 = vsel %vm2766, %v2689, 0
    %v2780 = vsel %vm2766, %v2690, 0
    %v2783 = vsel %vm2766, %v2691, 0
    %v2786 = vsel %vm2766, %v2692, 0
    %v2789 = vsel %vm2766, %v2693, 0
    %v2792 = vsel %vm2766, %v2694, 0
    %v2795 = vsel %vm2766, %v2695, 0
    %v2798 = vsel %vm2766, %v2696, 0
    %v2801 = vsel %vm2766, %v2697, 0
    %v2804 = vsel %vm2766, %v2698, 0
    %v2807 = vsel %vm2766, %v2699, 0
    %v2810 = vsel %vm2766, %v2700, 0
    %v2813 = vsel %vm2766, %v2701, 0
    %2815 = vmatprep.subr.mxu0 0.0
    %2816 = vmatpush1.msra.mxu0 0.0
    %2817 = vmatprep.subr.mxu0 0.0
    %2818 = vmatpush1.msra.mxu0 0.0
    %2819 = vmatprep.subr.mxu0 0.0
    %2820 = vmatpush1.msra.mxu0 0.0
    %2821 = vmatprep.subr.mxu0 0.0
    %2822 = vmatpush1.msra.mxu0 0.0
    %2823 = vmatprep.subr.mxu0 0.0
    %2824 = vmatpush1.msra.mxu0 0.0
    %2825 = vmatprep.subr.mxu0 0.0
    %2826 = vmatpush1.msra.mxu0 0.0
    %2827 = vmatprep.subr.mxu0 0.0
    %2828 = vmatpush1.msra.mxu0 0.0
    %2829 = vmatprep.subr.mxu0 0.0
    %2830 = vmatpush1.msra.mxu0 0.0
    %2831 = vmatprep.subr.mxu0 0.0
    %2832 = vmatpush1.msra.mxu0 0.0
    %2833 = vmatprep.subr.mxu0 0.0
    %2834 = vmatpush1.msra.mxu0 0.0
    %2835 = vmatprep.subr.mxu0 0.0
    %2836 = vmatpush1.msra.mxu0 0.0
    %2837 = vmatprep.subr.mxu0 %v2172
    %2838 = vmatpush1.msra.mxu0 %v2171
    %2839 = vmatprep.subr.mxu0 %v2168
    %2840 = vmatpush1.msra.mxu0 %v2167
    %2841 = vmatprep.subr.mxu0 %v2164
    %2842 = vmatpush1.msra.mxu0 %v2163
    %2843 = vmatprep.subr.mxu0 %v2160
    %2844 = vmatpush1.msra.mxu0 %v2159
    %2845 = vmatprep.subr.mxu0 %v2156
    %2846 = vmatpush1.msra.mxu0 %v2155
    %2847 = vmatprep.subr.mxu0 0.0
    %2848 = vmatpush2.msra.mxu0 0.0
    %2849 = vmatprep.subr.mxu0 0.0
    %2850 = vmatpush2.msra.mxu0 0.0
    %2851 = vmatprep.subr.mxu0 0.0
    %2852 = vmatpush2.msra.mxu0 0.0
    %2853 = vmatprep.subr.mxu0 0.0
    %2854 = vmatpush2.msra.mxu0 0.0
    %2855 = vmatprep.subr.mxu0 0.0
    %2856 = vmatpush2.msra.mxu0 0.0
    %2857 = vmatprep.subr.mxu0 0.0
    %2858 = vmatpush2.msra.mxu0 0.0
    %2859 = vmatprep.subr.mxu0 0.0
    %2860 = vmatpush2.msra.mxu0 0.0
    %2861 = vmatprep.subr.mxu0 0.0
    %2862 = vmatpush2.msra.mxu0 0.0
    %2863 = vmatprep.subr.mxu0 0.0
    %2864 = vmatpush2.msra.mxu0 0.0
    %2865 = vmatprep.subr.mxu0 0.0
    %2866 = vmatpush2.msra.mxu0 0.0
    %2867 = vmatprep.subr.mxu0 0.0
    %2868 = vmatpush2.msra.mxu0 0.0
    %2869 = vmatprep.subr.mxu0 0.0
    %2870 = vmatpush2.msra.mxu0 0.0
    %2871 = vmatprep.subr.mxu0 0.0
    %2872 = vmatpush2.msra.mxu0 0.0
    %2873 = vmatprep.subr.mxu0 0.0
    %2874 = vmatpush2.msra.mxu0 0.0
    %2875 = vmatprep.subr.mxu0 0.0
    %2876 = vmatpush2.msra.mxu0 0.0
    %2877 = vmatprep.subr.mxu0 0.0
    %2878 = vmatpush2.msra.mxu0 0.0
    %2879 = vmatprep.mubr.f32.mxu0 0.0
    %2880 = vmatmul.mubr.f32.gmra.mxu0 %v2768
    %v2881 = vpop.f32.mrf.mxu0
    %v2882 = vadd.f32 %v2704, %v2881
    %v2883 = vpop.f32.mrf.mxu0
    %v2884 = vadd.f32 %v2704, %v2883
    %2885 = vmatprep.mubr.f32.mxu0 0.0
    %2886 = vmatmul.mubr.f32.gmra.mxu0 %v2771
    %v2887 = vpop.f32.mrf.mxu0
    %v2888 = vadd.f32 %v2708, %v2887
    %v2889 = vpop.f32.mrf.mxu0
    %v2890 = vadd.f32 %v2708, %v2889
    %2891 = vmatprep.mubr.f32.mxu0 0.0
    %2892 = vmatmul.mubr.f32.gmra.mxu0 %v2774
    %v2893 = vpop.f32.mrf.mxu0
    %v2894 = vadd.f32 %v2712, %v2893
    %v2895 = vpop.f32.mrf.mxu0
    %v2896 = vadd.f32 %v2712, %v2895
    %2897 = vmatprep.mubr.f32.mxu0 0.0
    %2898 = vmatmul.mubr.f32.gmra.mxu0 %v2777
    %v2899 = vpop.f32.mrf.mxu0
    %v2900 = vadd.f32 %v2716, %v2899
    %v2901 = vpop.f32.mrf.mxu0
    %v2902 = vadd.f32 %v2716, %v2901
    %2903 = vmatprep.mubr.f32.mxu0 0.0
    %2904 = vmatmul.mubr.f32.gmra.mxu0 %v2780
    %v2905 = vpop.f32.mrf.mxu0
    %v2906 = vadd.f32 %v2720, %v2905
    %v2907 = vpop.f32.mrf.mxu0
    %v2908 = vadd.f32 %v2720, %v2907
    %2909 = vmatprep.mubr.f32.mxu0 0.0
    %2910 = vmatmul.mubr.f32.gmra.mxu0 %v2783
    %v2911 = vpop.f32.mrf.mxu0
    %v2912 = vadd.f32 %v2724, %v2911
    %v2913 = vpop.f32.mrf.mxu0
    %v2914 = vadd.f32 %v2724, %v2913
    %2915 = vmatprep.mubr.f32.mxu0 0.0
    %2916 = vmatmul.mubr.f32.gmra.mxu0 %v2786
    %v2917 = vpop.f32.mrf.mxu0
    %v2918 = vadd.f32 %v2728, %v2917
    %v2919 = vpop.f32.mrf.mxu0
    %v2920 = vadd.f32 %v2728, %v2919
    %2921 = vmatprep.mubr.f32.mxu0 0.0
    %2922 = vmatmul.mubr.f32.gmra.mxu0 %v2789
    %v2923 = vpop.f32.mrf.mxu0
    %v2924 = vadd.f32 %v2732, %v2923
    %v2925 = vpop.f32.mrf.mxu0
    %v2926 = vadd.f32 %v2732, %v2925
    %2927 = vmatprep.mubr.f32.mxu0 0.0
    %2928 = vmatmul.mubr.f32.gmra.mxu0 %v2792
    %v2929 = vpop.f32.mrf.mxu0
    %v2930 = vadd.f32 %v2736, %v2929
    %v2931 = vpop.f32.mrf.mxu0
    %v2932 = vadd.f32 %v2736, %v2931
    %2933 = vmatprep.mubr.f32.mxu0 0.0
    %2934 = vmatmul.mubr.f32.gmra.mxu0 %v2795
    %v2935 = vpop.f32.mrf.mxu0
    %v2936 = vadd.f32 %v2740, %v2935
    %v2937 = vpop.f32.mrf.mxu0
    %v2938 = vadd.f32 %v2740, %v2937
    %2939 = vmatprep.mubr.f32.mxu0 0.0
    %2940 = vmatmul.mubr.f32.gmra.mxu0 %v2798
    %v2941 = vpop.f32.mrf.mxu0
    %v2942 = vadd.f32 %v2744, %v2941
    %v2943 = vpop.f32.mrf.mxu0
    %v2944 = vadd.f32 %v2744, %v2943
    %2945 = vmatprep.mubr.f32.mxu0 0.0
    %2946 = vmatmul.mubr.f32.gmra.mxu0 %v2801
    %v2947 = vpop.f32.mrf.mxu0
    %v2948 = vadd.f32 %v2748, %v2947
    %v2949 = vpop.f32.mrf.mxu0
    %v2950 = vadd.f32 %v2748, %v2949
    %2951 = vmatprep.mubr.f32.mxu0 0.0
    %2952 = vmatmul.mubr.f32.gmra.mxu0 %v2804
    %v2953 = vpop.f32.mrf.mxu0
    %v2954 = vadd.f32 %v2752, %v2953
    %v2955 = vpop.f32.mrf.mxu0
    %v2956 = vadd.f32 %v2752, %v2955
    %2957 = vmatprep.mubr.f32.mxu0 0.0
    %2958 = vmatmul.mubr.f32.gmra.mxu0 %v2807
    %v2959 = vpop.f32.mrf.mxu0
    %v2960 = vadd.f32 %v2756, %v2959
    %v2961 = vpop.f32.mrf.mxu0
    %v2962 = vadd.f32 %v2756, %v2961
    %2963 = vmatprep.mubr.f32.mxu0 0.0
    %2964 = vmatmul.mubr.f32.gmra.mxu0 %v2810
    %v2965 = vpop.f32.mrf.mxu0
    %v2966 = vadd.f32 %v2760, %v2965
    %v2967 = vpop.f32.mrf.mxu0
    %v2968 = vadd.f32 %v2760, %v2967
    %2969 = vmatprep.mubr.f32.mxu0 0.0
    %2970 = vmatmul.mubr.f32.gmra.mxu0 %v2813
    %v2971 = vpop.f32.mrf.mxu0
    %v2972 = vadd.f32 %v2764, %v2971
    %v2973 = vpop.f32.mrf.mxu0
    %v2974 = vadd.f32 %v2764, %v2973
    %2975 = vdwg.mxu0
    %2976 = vmatprep.subr.mxu0 0.0
    %2977 = vmatpush1.msra.mxu0 0.0
    %2978 = vmatprep.subr.mxu0 0.0
    %2979 = vmatpush1.msra.mxu0 0.0
    %2980 = vmatprep.subr.mxu0 0.0
    %2981 = vmatpush1.msra.mxu0 0.0
    %2982 = vmatprep.subr.mxu0 0.0
    %2983 = vmatpush1.msra.mxu0 0.0
    %2984 = vmatprep.subr.mxu0 0.0
    %2985 = vmatpush1.msra.mxu0 0.0
    %2986 = vmatprep.subr.mxu0 0.0
    %2987 = vmatpush1.msra.mxu0 0.0
    %2988 = vmatprep.subr.mxu0 0.0
    %2989 = vmatpush1.msra.mxu0 0.0
    %2990 = vmatprep.subr.mxu0 0.0
    %2991 = vmatpush1.msra.mxu0 0.0
    %2992 = vmatprep.subr.mxu0 0.0
    %2993 = vmatpush1.msra.mxu0 0.0
    %2994 = vmatprep.subr.mxu0 0.0
    %2995 = vmatpush1.msra.mxu0 0.0
    %2996 = vmatprep.subr.mxu0 0.0
    %2997 = vmatpush1.msra.mxu0 0.0
    %2998 = vmatprep.subr.mxu0 %v2174
    %2999 = vmatpush1.msra.mxu0 %v2173
    %3000 = vmatprep.subr.mxu0 %v2170
    %3001 = vmatpush1.msra.mxu0 %v2169
    %3002 = vmatprep.subr.mxu0 %v2166
    %3003 = vmatpush1.msra.mxu0 %v2165
    %3004 = vmatprep.subr.mxu0 %v2162
    %3005 = vmatpush1.msra.mxu0 %v2161
    %3006 = vmatprep.subr.mxu0 %v2158
    %3007 = vmatpush1.msra.mxu0 %v2157
    %3008 = vmatprep.subr.mxu0 0.0
    %3009 = vmatpush2.msra.mxu0 0.0
    %3010 = vmatprep.subr.mxu0 0.0
    %3011 = vmatpush2.msra.mxu0 0.0
    %3012 = vmatprep.subr.mxu0 0.0
    %3013 = vmatpush2.msra.mxu0 0.0
    %3014 = vmatprep.subr.mxu0 0.0
    %3015 = vmatpush2.msra.mxu0 0.0
    %3016 = vmatprep.subr.mxu0 0.0
    %3017 = vmatpush2.msra.mxu0 0.0
    %3018 = vmatprep.subr.mxu0 0.0
    %3019 = vmatpush2.msra.mxu0 0.0
    %3020 = vmatprep.subr.mxu0 0.0
    %3021 = vmatpush2.msra.mxu0 0.0
    %3022 = vmatprep.subr.mxu0 0.0
    %3023 = vmatpush2.msra.mxu0 0.0
    %3024 = vmatprep.subr.mxu0 0.0
    %3025 = vmatpush2.msra.mxu0 0.0
    %3026 = vmatprep.subr.mxu0 0.0
    %3027 = vmatpush2.msra.mxu0 0.0
    %3028 = vmatprep.subr.mxu0 0.0
    %3029 = vmatpush2.msra.mxu0 0.0
    %3030 = vmatprep.subr.mxu0 0.0
    %3031 = vmatpush2.msra.mxu0 0.0
    %3032 = vmatprep.subr.mxu0 0.0
    %3033 = vmatpush2.msra.mxu0 0.0
    %3034 = vmatprep.subr.mxu0 0.0
    %3035 = vmatpush2.msra.mxu0 0.0
    %3036 = vmatprep.subr.mxu0 0.0
    %3037 = vmatpush2.msra.mxu0 0.0
    %3038 = vmatprep.subr.mxu0 0.0
    %3039 = vmatpush2.msra.mxu0 0.0
    %3040 = vmatprep.mubr.f32.mxu0 0.0
    %3041 = vmatmul.mubr.f32.gmra.mxu0 %v2768
    %v3042 = vpop.f32.mrf.mxu0
    %v3043 = vadd.f32 %v2704, %v3042
    %v3044 = vpop.f32.mrf.mxu0
    %v3045 = vadd.f32 %v2704, %v3044
    %3046 = vmatprep.mubr.f32.mxu0 0.0
    %3047 = vmatmul.mubr.f32.gmra.mxu0 %v2771
    %v3048 = vpop.f32.mrf.mxu0
    %v3049 = vadd.f32 %v2708, %v3048
    %v3050 = vpop.f32.mrf.mxu0
    %v3051 = vadd.f32 %v2708, %v3050
    %3052 = vmatprep.mubr.f32.mxu0 0.0
    %3053 = vmatmul.mubr.f32.gmra.mxu0 %v2774
    %v3054 = vpop.f32.mrf.mxu0
    %v3055 = vadd.f32 %v2712, %v3054
    %v3056 = vpop.f32.mrf.mxu0
    %v3057 = vadd.f32 %v2712, %v3056
    %3058 = vmatprep.mubr.f32.mxu0 0.0
    %3059 = vmatmul.mubr.f32.gmra.mxu0 %v2777
    %v3060 = vpop.f32.mrf.mxu0
    %v3061 = vadd.f32 %v2716, %v3060
    %v3062 = vpop.f32.mrf.mxu0
    %v3063 = vadd.f32 %v2716, %v3062
    %3064 = vmatprep.mubr.f32.mxu0 0.0
    %3065 = vmatmul.mubr.f32.gmra.mxu0 %v2780
    %v3066 = vpop.f32.mrf.mxu0
    %v3067 = vadd.f32 %v2720, %v3066
    %v3068 = vpop.f32.mrf.mxu0
    %v3069 = vadd.f32 %v2720, %v3068
    %3070 = vmatprep.mubr.f32.mxu0 0.0
    %3071 = vmatmul.mubr.f32.gmra.mxu0 %v2783
    %v3072 = vpop.f32.mrf.mxu0
    %v3073 = vadd.f32 %v2724, %v3072
    %v3074 = vpop.f32.mrf.mxu0
    %v3075 = vadd.f32 %v2724, %v3074
    %3076 = vmatprep.mubr.f32.mxu0 0.0
    %3077 = vmatmul.mubr.f32.gmra.mxu0 %v2786
    %v3078 = vpop.f32.mrf.mxu0
    %v3079 = vadd.f32 %v2728, %v3078
    %v3080 = vpop.f32.mrf.mxu0
    %v3081 = vadd.f32 %v2728, %v3080
    %3082 = vmatprep.mubr.f32.mxu0 0.0
    %3083 = vmatmul.mubr.f32.gmra.mxu0 %v2789
    %v3084 = vpop.f32.mrf.mxu0
    %v3085 = vadd.f32 %v2732, %v3084
    %v3086 = vpop.f32.mrf.mxu0
    %v3087 = vadd.f32 %v2732, %v3086
    %3088 = vmatprep.mubr.f32.mxu0 0.0
    %3089 = vmatmul.mubr.f32.gmra.mxu0 %v2792
    %v3090 = vpop.f32.mrf.mxu0
    %v3091 = vadd.f32 %v2736, %v3090
    %v3092 = vpop.f32.mrf.mxu0
    %v3093 = vadd.f32 %v2736, %v3092
    %3094 = vmatprep.mubr.f32.mxu0 0.0
    %3095 = vmatmul.mubr.f32.gmra.mxu0 %v2795
    %v3096 = vpop.f32.mrf.mxu0
    %v3097 = vadd.f32 %v2740, %v3096
    %v3098 = vpop.f32.mrf.mxu0
    %v3099 = vadd.f32 %v2740, %v3098
    %3100 = vmatprep.mubr.f32.mxu0 0.0
    %3101 = vmatmul.mubr.f32.gmra.mxu0 %v2798
    %v3102 = vpop.f32.mrf.mxu0
    %v3103 = vadd.f32 %v2744, %v3102
    %v3104 = vpop.f32.mrf.mxu0
    %v3105 = vadd.f32 %v2744, %v3104
    %3106 = vmatprep.mubr.f32.mxu0 0.0
    %3107 = vmatmul.mubr.f32.gmra.mxu0 %v2801
    %v3108 = vpop.f32.mrf.mxu0
    %v3109 = vadd.f32 %v2748, %v3108
    %v3110 = vpop.f32.mrf.mxu0
    %v3111 = vadd.f32 %v2748, %v3110
    %3112 = vmatprep.mubr.f32.mxu0 0.0
    %3113 = vmatmul.mubr.f32.gmra.mxu0 %v2804
    %v3114 = vpop.f32.mrf.mxu0
    %v3115 = vadd.f32 %v2752, %v3114
    %v3116 = vpop.f32.mrf.mxu0
    %v3117 = vadd.f32 %v2752, %v3116
    %3118 = vmatprep.mubr.f32.mxu0 0.0
    %3119 = vmatmul.mubr.f32.gmra.mxu0 %v2807
    %v3120 = vpop.f32.mrf.mxu0
    %v3121 = vadd.f32 %v2756, %v3120
    %v3122 = vpop.f32.mrf.mxu0
    %v3123 = vadd.f32 %v2756, %v3122
    %3124 = vmatprep.mubr.f32.mxu0 0.0
    %3125 = vmatmul.mubr.f32.gmra.mxu0 %v2810
    %v3126 = vpop.f32.mrf.mxu0
    %v3127 = vadd.f32 %v2760, %v3126
    %v3128 = vpop.f32.mrf.mxu0
    %v3129 = vadd.f32 %v2760, %v3128
    %3130 = vmatprep.mubr.f32.mxu0 0.0
    %3131 = vmatmul.mubr.f32.gmra.mxu0 %v2813
    %v3132 = vpop.f32.mrf.mxu0
    %v3133 = vadd.f32 %v2764, %v3132
    %v3134 = vpop.f32.mrf.mxu0
    %v3135 = vadd.f32 %v2764, %v3134
    %3136 = vdwg.mxu0
    %v3137 = vmax.f32 %v2882, 0.0
    %v3138 = vmax.f32 %v2884, 0.0
    %v3139 = vmax.f32 %v3043, 0.0
    %v3140 = vmax.f32 %v3045, 0.0
    %v3141 = vmax.f32 %v2888, 0.0
    %v3142 = vmax.f32 %v2890, 0.0
    %v3143 = vmax.f32 %v3049, 0.0
    %v3144 = vmax.f32 %v3051, 0.0
    %v3145 = vmax.f32 %v2894, 0.0
    %v3146 = vmax.f32 %v2896, 0.0
    %v3147 = vmax.f32 %v3055, 0.0
    %v3148 = vmax.f32 %v3057, 0.0
    %v3149 = vmax.f32 %v2900, 0.0
    %v3150 = vmax.f32 %v2902, 0.0
    %v3151 = vmax.f32 %v3061, 0.0
    %v3152 = vmax.f32 %v3063, 0.0
    %v3153 = vmax.f32 %v2906, 0.0
    %v3154 = vmax.f32 %v2908, 0.0
    %v3155 = vmax.f32 %v3067, 0.0
    %v3156 = vmax.f32 %v3069, 0.0
    %v3157 = vmax.f32 %v2912, 0.0
    %v3158 = vmax.f32 %v2914, 0.0
    %v3159 = vmax.f32 %v3073, 0.0
    %v3160 = vmax.f32 %v3075, 0.0
    %v3161 = vmax.f32 %v2918, 0.0
    %v3162 = vmax.f32 %v2920, 0.0
    %v3163 = vmax.f32 %v3079, 0.0
    %v3164 = vmax.f32 %v3081, 0.0
    %v3165 = vmax.f32 %v2924, 0.0
    %v3166 = vmax.f32 %v2926, 0.0
    %v3167 = vmax.f32 %v3085, 0.0
    %v3168 = vmax.f32 %v3087, 0.0
    %v3169 = vmax.f32 %v2930, 0.0
    %v3170 = vmax.f32 %v2932, 0.0
    %v3171 = vmax.f32 %v3091, 0.0
    %v3172 = vmax.f32 %v3093, 0.0
    %v3173 = vmax.f32 %v2936, 0.0
    %v3174 = vmax.f32 %v2938, 0.0
    %v3175 = vmax.f32 %v3097, 0.0
    %v3176 = vmax.f32 %v3099, 0.0
    %v3177 = vmax.f32 %v2942, 0.0
    %v3178 = vmax.f32 %v2944, 0.0
    %v3179 = vmax.f32 %v3103, 0.0
    %v3180 = vmax.f32 %v3105, 0.0
    %v3181 = vmax.f32 %v2948, 0.0
    %v3182 = vmax.f32 %v2950, 0.0
    %v3183 = vmax.f32 %v3109, 0.0
    %v3184 = vmax.f32 %v3111, 0.0
    %v3185 = vmax.f32 %v2954, 0.0
    %v3186 = vmax.f32 %v2956, 0.0
    %v3187 = vmax.f32 %v3115, 0.0
    %v3188 = vmax.f32 %v3117, 0.0
    %v3189 = vmax.f32 %v2960, 0.0
    %v3190 = vmax.f32 %v2962, 0.0
    %v3191 = vmax.f32 %v3121, 0.0
    %v3192 = vmax.f32 %v3123, 0.0
    %v3193 = vmax.f32 %v2966, 0.0
    %v3194 = vmax.f32 %v2968, 0.0
    %v3195 = vmax.f32 %v3127, 0.0
    %v3196 = vmax.f32 %v3129, 0.0
    %v3197 = vmax.f32 %v2972, 0.0
    %v3198 = vmax.f32 %v2974, 0.0
    %v3199 = vmax.f32 %v3133, 0.0
    %v3200 = vmax.f32 %v3135, 0.0
    %v3201 = vld [vmem:[%s4 + $0x8] sm:$0x1]
    %3202 = vmatprep.subr.mxu0 %v3198
    %3203 = vmatpush1.msra.mxu0 %v3197
    %3204 = vmatprep.subr.mxu0 %v3194
    %3205 = vmatpush1.msra.mxu0 %v3193
    %3206 = vmatprep.subr.mxu0 %v3190
    %3207 = vmatpush1.msra.mxu0 %v3189
    %3208 = vmatprep.subr.mxu0 %v3186
    %3209 = vmatpush1.msra.mxu0 %v3185
    %3210 = vmatprep.subr.mxu0 %v3182
    %3211 = vmatpush1.msra.mxu0 %v3181
    %3212 = vmatprep.subr.mxu0 %v3178
    %3213 = vmatpush1.msra.mxu0 %v3177
    %3214 = vmatprep.subr.mxu0 %v3174
    %3215 = vmatpush1.msra.mxu0 %v3173
    %3216 = vmatprep.subr.mxu0 %v3170
    %3217 = vmatpush1.msra.mxu0 %v3169
    %3218 = vmatprep.subr.mxu0 %v3166
    %3219 = vmatpush1.msra.mxu0 %v3165
    %3220 = vmatprep.subr.mxu0 %v3162
    %3221 = vmatpush1.msra.mxu0 %v3161
    %3222 = vmatprep.subr.mxu0 %v3158
    %3223 = vmatpush1.msra.mxu0 %v3157
    %3224 = vmatprep.subr.mxu0 %v3154
    %3225 = vmatpush1.msra.mxu0 %v3153
    %3226 = vmatprep.subr.mxu0 %v3150
    %3227 = vmatpush1.msra.mxu0 %v3149
    %3228 = vmatprep.subr.mxu0 %v3146
    %3229 = vmatpush1.msra.mxu0 %v3145
    %3230 = vmatprep.subr.mxu0 %v3142
    %3231 = vmatpush1.msra.mxu0 %v3141
    %3232 = vmatprep.subr.mxu0 %v3138
    %3233 = vmatpush1.msra.mxu0 %v3137
    %3234 = vmatprep.subr.mxu0 0.0
    %3235 = vmatpush2.msra.mxu0 0.0
    %3236 = vmatprep.subr.mxu0 0.0
    %3237 = vmatpush2.msra.mxu0 0.0
    %3238 = vmatprep.subr.mxu0 0.0
    %3239 = vmatpush2.msra.mxu0 0.0
    %3240 = vmatprep.subr.mxu0 0.0
    %3241 = vmatpush2.msra.mxu0 0.0
    %3242 = vmatprep.subr.mxu0 0.0
    %3243 = vmatpush2.msra.mxu0 0.0
    %3244 = vmatprep.subr.mxu0 0.0
    %3245 = vmatpush2.msra.mxu0 0.0
    %3246 = vmatprep.subr.mxu0 0.0
    %3247 = vmatpush2.msra.mxu0 0.0
    %3248 = vmatprep.subr.mxu0 0.0
    %3249 = vmatpush2.msra.mxu0 0.0
    %3250 = vmatprep.subr.mxu0 0.0
    %3251 = vmatpush2.msra.mxu0 0.0
    %3252 = vmatprep.subr.mxu0 0.0
    %3253 = vmatpush2.msra.mxu0 0.0
    %3254 = vmatprep.subr.mxu0 0.0
    %3255 = vmatpush2.msra.mxu0 0.0
    %3256 = vmatprep.subr.mxu0 0.0
    %3257 = vmatpush2.msra.mxu0 0.0
    %3258 = vmatprep.subr.mxu0 0.0
    %3259 = vmatpush2.msra.mxu0 0.0
    %3260 = vmatprep.subr.mxu0 0.0
    %3261 = vmatpush2.msra.mxu0 0.0
    %3262 = vmatprep.subr.mxu0 0.0
    %3263 = vmatpush2.msra.mxu0 0.0
    %3264 = vmatprep.subr.mxu0 0.0
    %3265 = vmatpush2.msra.mxu0 0.0
    %3266 = vmatprep.mubr.f32.mxu0 0.0
    %3267 = vmatmul.mubr.f32.gmra.mxu0 %v3201
    %v3268 = vpop.f32.mrf.mxu0
    %v3269 = vadd.f32 0.0, %v3268
    %v3270 = vpop.f32.mrf.mxu0
    %v3271 = vadd.f32 0.0, %v3270
    %3272 = vdwg.mxu0
    %3273 = vmatprep.subr.mxu0 %v3200
    %3274 = vmatpush1.msra.mxu0 %v3199
    %3275 = vmatprep.subr.mxu0 %v3196
    %3276 = vmatpush1.msra.mxu0 %v3195
    %3277 = vmatprep.subr.mxu0 %v3192
    %3278 = vmatpush1.msra.mxu0 %v3191
    %3279 = vmatprep.subr.mxu0 %v3188
    %3280 = vmatpush1.msra.mxu0 %v3187
    %3281 = vmatprep.subr.mxu0 %v3184
    %3282 = vmatpush1.msra.mxu0 %v3183
    %3283 = vmatprep.subr.mxu0 %v3180
    %3284 = vmatpush1.msra.mxu0 %v3179
    %3285 = vmatprep.subr.mxu0 %v3176
    %3286 = vmatpush1.msra.mxu0 %v3175
    %3287 = vmatprep.subr.mxu0 %v3172
    %3288 = vmatpush1.msra.mxu0 %v3171
    %3289 = vmatprep.subr.mxu0 %v3168
    %3290 = vmatpush1.msra.mxu0 %v3167
    %3291 = vmatprep.subr.mxu0 %v3164
    %3292 = vmatpush1.msra.mxu0 %v3163
    %3293 = vmatprep.subr.mxu0 %v3160
    %3294 = vmatpush1.msra.mxu0 %v3159
    %3295 = vmatprep.subr.mxu0 %v3156
    %3296 = vmatpush1.msra.mxu0 %v3155
    %3297 = vmatprep.subr.mxu0 %v3152
    %3298 = vmatpush1.msra.mxu0 %v3151
    %3299 = vmatprep.subr.mxu0 %v3148
    %3300 = vmatpush1.msra.mxu0 %v3147
    %3301 = vmatprep.subr.mxu0 %v3144
    %3302 = vmatpush1.msra.mxu0 %v3143
    %3303 = vmatprep.subr.mxu0 %v3140
    %3304 = vmatpush1.msra.mxu0 %v3139
    %3305 = vmatprep.subr.mxu0 0.0
    %3306 = vmatpush2.msra.mxu0 0.0
    %3307 = vmatprep.subr.mxu0 0.0
    %3308 = vmatpush2.msra.mxu0 0.0
    %3309 = vmatprep.subr.mxu0 0.0
    %3310 = vmatpush2.msra.mxu0 0.0
    %3311 = vmatprep.subr.mxu0 0.0
    %3312 = vmatpush2.msra.mxu0 0.0
    %3313 = vmatprep.subr.mxu0 0.0
    %3314 = vmatpush2.msra.mxu0 0.0
    %3315 = vmatprep.subr.mxu0 0.0
    %3316 = vmatpush2.msra.mxu0 0.0
    %3317 = vmatprep.subr.mxu0 0.0
    %3318 = vmatpush2.msra.mxu0 0.0
    %3319 = vmatprep.subr.mxu0 0.0
    %3320 = vmatpush2.msra.mxu0 0.0
    %3321 = vmatprep.subr.mxu0 0.0
    %3322 = vmatpush2.msra.mxu0 0.0
    %3323 = vmatprep.subr.mxu0 0.0
    %3324 = vmatpush2.msra.mxu0 0.0
    %3325 = vmatprep.subr.mxu0 0.0
    %3326 = vmatpush2.msra.mxu0 0.0
    %3327 = vmatprep.subr.mxu0 0.0
    %3328 = vmatpush2.msra.mxu0 0.0
    %3329 = vmatprep.subr.mxu0 0.0
    %3330 = vmatpush2.msra.mxu0 0.0
    %3331 = vmatprep.subr.mxu0 0.0
    %3332 = vmatpush2.msra.mxu0 0.0
    %3333 = vmatprep.subr.mxu0 0.0
    %3334 = vmatpush2.msra.mxu0 0.0
    %3335 = vmatprep.subr.mxu0 0.0
    %3336 = vmatpush2.msra.mxu0 0.0
    %3337 = vmatprep.mubr.f32.mxu0 0.0
    %3338 = vmatmul.mubr.f32.gmra.mxu0 %v3201
    %v3339 = vpop.f32.mrf.mxu0
    %v3340 = vadd.f32 0.0, %v3339
    %v3341 = vpop.f32.mrf.mxu0
    %v3342 = vadd.f32 0.0, %v3341
    %3343 = vdwg.mxu0
    %v3344 = vadd.f32 %v2130, %v2611
    %v3345 = vadd.f32 %v2131, %v2613
    %v3346 = vadd.f32 %v2132, %v2682
    %v3347 = vadd.f32 %v2133, %v2684
    %v3348 = vadd.f32 %v3344, %v3269
    %v3349 = vadd.f32 %v3345, %v3271
    %v3350 = vadd.f32 %v3346, %v3340
    %v3351 = vadd.f32 %v3347, %v3342
    %v3352 = vstv %s2128
    %v3353 = vadd.f32 %v3348, %v3352
    %v3354 = vadd.f32 %v3349, %v3352
    %v3355 = vadd.f32 %v3350, %v3352
    %v3356 = vadd.f32 %v3351, %v3352
    %v3357 = vmul.f32 %v3353, 0.5
    %v3358 = vmul.f32 %v3354, 0.5
    %v3359 = vmul.f32 %v3355, 0.5
    %v3360 = vmul.f32 %v3356, 0.5
    %v3361 = vtanh.pop %v3357
    %v3362 = vtanh.pop %v3358
    %v3363 = vtanh.pop %v3359
    %v3364 = vtanh.pop %v3360
    %v3365 = vadd.f32 %v3361, 1.0
    %v3366 = vadd.f32 %v3362, 1.0
    %v3367 = vadd.f32 %v3363, 1.0
    %v3368 = vadd.f32 %v3364, 1.0
    %v3369 = vmul.f32 %v3365, 0.5
    %v3370 = vmul.f32 %v3366, 0.5
    %v3371 = vmul.f32 %v3367, 0.5
    %v3372 = vmul.f32 %v3368, 0.5
    %v3377 = vcombine.low %v3369, %v3370
    %v3378 = vcombine.low %v3371, %v3372
    %v3380 = vunpack.c.l.s4 1966171168
    %v3381 = vunpack.c.0.s8 %v3380
    %v3382 = vlaneseq
    %v3383 = vshrl.u32 %v3382, 7
    %v3384 = vsub.s32 %v3381, %v3383
    %v3385 = vrot.slane %v3377, %v3384
    %v3387 = vunpack.c.l.s4 1966171168
    %v3388 = vunpack.c.0.s8 %v3387
    %v3389 = vlaneseq
    %v3390 = vshrl.u32 %v3389, 7
    %v3391 = vsub.s32 %v3388, %v3390
    %v3392 = vrot.slane %v3378, %v3391
    %v3393 = vcombine.low %v3385, %v3392
    %v3395 = vunpack.c.l.s4 1966171168
    %v3396 = vunpack.c.0.s8 %v3395
    %v3397 = vlaneseq
    %v3398 = vshrl.u32 %v3397, 7
    %v3399 = vsub.s32 %v3396, %v3398
    %v3400 = vrot.slane %v3393, %v3399
    %v3402 = vlaneseq
    %vm3403 = vcmp.ge.s32.totalorder %v3402, 0
    %vm3404 = vcmp.lt.s32.totalorder %v3402, 512
    %vm3405 = vmand %vm3403, %vm3404
    %3406 = vst.msk [vmem:[#allocation5] sm:$0xf] %vm3405, %v3400
    // Predicated region
    $region30: #{tpu_custom_call.1} parent=1 // pred_check
      _
    $region31: #{tpu_custom_call.1} parent=1 // pred_check_branch
      %3408 = sbr.rel (0) target = $region33
    $region32: #{tpu_custom_call.1} parent=1 // pred_region
      %s3410 = ssub.s32 64, 16
      %3411 = vsyncadd [#allocation3], %s3410
      %s3413 = sshll.u32 [#allocation5], 4
      %s3414 = int_to_ptr.vmem [resolvable:$true] %s3413
      %3416 = dma.vmem_to_hbm [thread:$0]  %s3414, 16, %s6, [#allocation3]
    $region33: #{tpu_custom_call.1} parent=1 // pred_fallthru
      _
    // Predicated region
    $region34: #{tpu_custom_call.1} parent=1 // pred_check
      _
    $region35: #{tpu_custom_call.1} parent=1 // pred_check_branch
      %3418 = sbr.rel (0) target = $region37
    $region36: #{tpu_custom_call.1} parent=1 // pred_region
      %3419 = dma.done [#allocation3], 64
    $region37: #{tpu_custom_call.1} parent=1 // pred_fallthru
      _
    %3420 = vsyncpa [#allocation3], 1
    %3421 = vsyncpa [#allocation4], 1

</llo_original>
